<compile_context>
chip_gen: v7x
topology: tpu7x:2x2x1
jax: 0.10.0
libtpu: 0.0.40
codegen_flags: <defaults>
</compile_context>

<pallas_src>
import math
import functools

import jax
import jax.numpy as jnp
from jax.experimental import pallas as pl
from jax.experimental.pallas import tpu as pltpu


# ------------------------------- helpers ------------------------------------

def _layer_norm(x, gamma, beta, eps=1e-5):
    """x: [M, D]; gamma/beta: [1, D]. Statistics in f32 (matches PyTorch)."""
    mean = jnp.mean(x, axis=-1, keepdims=True)
    var = jnp.mean((x - mean) ** 2, axis=-1, keepdims=True)
    return (x - mean) * jax.lax.rsqrt(var + eps) * gamma + beta


def _pick_tile(n, candidates):
    for c in candidates:
        if n % c == 0:
            return c
    return n


def _encoder_vmem_limit(TB, S, D, F):
    """Derive vmem_limit_bytes from the actual per-step footprint (f32)."""
    w_bytes = 4 * (3 * D * D + D * D + 2 * D * F + 3 * D + F + 6 * D)
    act_bytes = 4 * TB * S * D
    need = 2 * w_bytes + 3 * act_bytes           # 2x buffered weights + in/out act
    need = int(need * 1.5) + (2 << 20)           # headroom for temporaries
    # TODO(synk): for real dims on v7x (64 MiB VMEM) cast weights to bf16 or
    # stream the FFN weights in chunks instead of raising this limit.
    return max(32 << 20, min(need, 96 << 20))


# ----------------------------- Pallas kernels -------------------------------

def encoder_stack_kernel(n_heads,
                         x_ref,
                         ln1_g_ref, ln1_b_ref,
                         qkv_w_ref, qkv_b_ref,
                         out_w_ref, out_b_ref,
                         ln2_g_ref, ln2_b_ref,
                         w1_ref, b1_ref, w2_ref, b2_ref,
                         o_ref):
    """Applies encoder layer l = program_id(1) to the VMEM-resident activation.

    Grid = (batch_tiles, n_layers). o_ref's block index depends only on the
    batch tile, so it persists in VMEM across the layer axis and carries the
    activation from one layer to the next; per-layer weights are streamed
    (and double-buffered) per grid step.
    """
    l = pl.program_id(1)

    @pl.when(l == 0)
    def _():                              # load the embedded input once per batch tile
        o_ref[...] = x_ref[...]

    TB, S, D = o_ref.shape
    H = n_heads
    hd = D // H
    M = TB * S
    scale = 1.0 / math.sqrt(hd)

    x = o_ref[...].reshape(M, D)

    # ---- self-attention block (pre-norm) ----
    xn = _layer_norm(x, ln1_g_ref[0], ln1_b_ref[0])

    # Fused, lane-dense QKV projection: [M, D] @ [D, 3D].
    qkv = jnp.dot(xn, qkv_w_ref[0],
                  preferred_element_type=jnp.float32) + qkv_b_ref[0]
    q_all = qkv[:, 0 * D:1 * D] * scale   # scale hoisted out of the head loop
    k_all = qkv[:, 1 * D:2 * D]
    v_all = qkv[:, 2 * D:3 * D]

    # Causal mask generated in-kernel (no HBM/VMEM-resident [S,S] f32 mask),
    # broadcast hoisted out of the head loop.
    row_ids = jax.lax.broadcasted_iota(jnp.int32, (S, S), 0)
    col_ids = jax.lax.broadcasted_iota(jnp.int32, (S, S), 1)
    mask = jnp.where(col_ids > row_ids, jnp.float32(-jnp.inf), jnp.float32(0.0))
    mask_b = jnp.broadcast_to(mask, (TB, S, S))

    # TODO(synk): for large H / S replace this static head loop with a
    # fori_loop / flash-style online-softmax loop to bound live ranges.
    attn = jnp.zeros((M, D), jnp.float32)
    for h in range(H):
        q_h = q_all[:, h * hd:(h + 1) * hd].reshape(TB, S, hd)
        k_h = k_all[:, h * hd:(h + 1) * hd].reshape(TB, S, hd)
        v_h = v_all[:, h * hd:(h + 1) * hd].reshape(TB, S, hd)
        s = jnp.einsum('bqe,bke->bqk', q_h, k_h,
                       preferred_element_type=jnp.float32) + mask_b
        m = jnp.max(s, axis=-1, keepdims=True)
        p = jnp.exp(s - m)
        p = p / jnp.sum(p, axis=-1, keepdims=True)     # exact divide (f32 parity)
        ctx = jnp.einsum('bqk,bke->bqe', p, v_h,
                         preferred_element_type=jnp.float32)       # [TB, S, hd]
        # Accumulate against this head's K-leading slice of the out-projection.
        attn = attn + jnp.dot(ctx.reshape(M, hd), out_w_ref[0, h],
                              preferred_element_type=jnp.float32)
    x = x + attn + out_b_ref[0]

    # ---- feed-forward block (pre-norm) ----
    xn2 = _layer_norm(x, ln2_g_ref[0], ln2_b_ref[0])
    hid = jnp.dot(xn2, w1_ref[0], preferred_element_type=jnp.float32) + b1_ref[0]
    hid = jnp.maximum(hid, 0.0)           # ReLU
    ff = jnp.dot(hid, w2_ref[0], preferred_element_type=jnp.float32) + b2_ref[0]

    o_ref[...] = (x + ff).reshape(TB, S, D)


def decoder_kernel(x_ref, w_ref, b_ref, o_ref):
    """Per-tile final linear: logits = x @ W + b.
    x: [TM, D], W: [D, TN] (K-leading), b: [1, TN] -> out: [TM, TN]."""
    o_ref[...] = (jnp.dot(x_ref[...], w_ref[...],
                          preferred_element_type=jnp.float32)
                  + b_ref[...])


# ------------------------------ JAX wrappers ---------------------------------

def run_encoder_stack(x, lp, n_heads, *, batch_tile=None):
    """x: [B, S, D]; lp: dict of stacked, host-pre-transposed per-layer weights."""
    B, S, D = x.shape
    L = lp['ln1_g'].shape[0]
    F = lp['w1'].shape[2]

    # Default: TB = B so every layer's weights cross HBM exactly once.
    # On v7x pass batch_tile=B//2 (or smaller) so both TensorCores get work.
    TB = B if batch_tile is None else batch_tile
    if TB <= 0 or B % TB != 0:
        TB = B
    grid = (B // TB, L)

    def xmap(b, l):     # activation / output: depends only on batch tile
        return (b, 0, 0)

    def wmap3(b, l):    # 3-D stacked weights: pick layer l
        return (l, 0, 0)

    def wmap4(b, l):    # 4-D stacked weights: pick layer l
        return (l, 0, 0, 0)

    def spec_w(a):
        return pl.BlockSpec((1,) + a.shape[1:],
                            wmap4 if a.ndim == 4 else wmap3)

    weight_order = ('ln1_g', 'ln1_b', 'qkv_w', 'qkv_b', 'out_w', 'out_b',
                    'ln2_g', 'ln2_b', 'w1', 'b1', 'w2', 'b2')
    weights = [lp[k] for k in weight_order]

    in_specs = [pl.BlockSpec((TB, S, D), xmap)] + [spec_w(w) for w in weights]

    return pl.pallas_call(
        functools.partial(encoder_stack_kernel, n_heads),
        grid=grid,
        in_specs=in_specs,
        out_specs=pl.BlockSpec((TB, S, D), xmap),
        out_shape=jax.ShapeDtypeStruct((B, S, D), jnp.float32),
        input_output_aliases={0: 0},          # donate the embedded input buffer
        compiler_params=pltpu.CompilerParams(
            dimension_semantics=("parallel", "arbitrary"),
            vmem_limit_bytes=_encoder_vmem_limit(TB, S, D, F)),
    )(x, *weights)


def run_decoder(x, w_dec_t, b_dec):
    """x: [B, S, D]; w_dec_t: [D, V] (K-leading); b_dec: [1, V] -> [B, S, V]."""
    B, S, D = x.shape
    V = w_dec_t.shape[1]
    rows = B * S
    x2 = x.reshape(rows, D)

    # Pad vocab to a multiple of 128 so output stores are lane-dense (no
    # masked partial stores); slice the padding off afterwards.
    Vp = ((V + 127) // 128) * 128
    if Vp != V:
        w = jnp.pad(w_dec_t, ((0, 0), (0, Vp - V)))
        b = jnp.pad(b_dec, ((0, 0), (0, Vp - V)))
    else:
        w, b = w_dec_t, b_dec

    TM = _pick_tile(rows, (1024, 512, 256, 128, 64, 32, 16, 8))
    TN = _pick_tile(Vp, (512, 256, 128))
    grid = (rows // TM, Vp // TN)

    out = pl.pallas_call(
        decoder_kernel,
        grid=grid,
        in_specs=[pl.BlockSpec((TM, D), lambda i, j: (i, 0)),
                  pl.BlockSpec((D, TN), lambda i, j: (0, j)),
                  pl.BlockSpec((1, TN), lambda i, j: (0, j))],
        out_specs=pl.BlockSpec((TM, TN), lambda i, j: (i, j)),
        out_shape=jax.ShapeDtypeStruct((rows, Vp), jnp.float32),
        compiler_params=pltpu.CompilerParams(
            dimension_semantics=("parallel", "parallel")),
    )(x2, w, b)
    return out[:, :V].reshape(B, S, V)


# --------------------------- parameter / glue code ---------------------------

def make_positional_encoding(max_len, d_model):
    position = jnp.arange(max_len, dtype=jnp.float32)[:, None]
    div_term = jnp.exp(jnp.arange(0, d_model, 2, dtype=jnp.float32)
                       * (-math.log(10000.0) / d_model))
    pe = jnp.zeros((max_len, d_model), dtype=jnp.float32)
    pe = pe.at[:, 0::2].set(jnp.sin(position * div_term))
    pe = pe.at[:, 1::2].set(jnp.cos(position * div_term))
    return pe                              # [max_len, d_model]


def generate_square_subsequent_mask(sz):
    i = jnp.arange(sz)
    return jnp.where(i[None, :] > i[:, None], -jnp.inf, 0.0).astype(jnp.float32)


def init_params(key, n_tokens, d_model, n_heads, d_hid, n_layers):
    initrange = 0.1
    hd = d_model // n_heads
    L = n_layers
    keys = jax.random.split(key, 2 + 4 * L)

    params = {}
    params['embedding'] = jax.random.uniform(
        keys[0], (n_tokens, d_model), jnp.float32, -initrange, initrange)
    dec_w = jax.random.uniform(
        keys[1], (n_tokens, d_model), jnp.float32, -initrange, initrange)
    params['dec_w_t'] = dec_w.T                                  # [D, V] K-leading
    params['dec_b'] = jnp.zeros((1, n_tokens), jnp.float32)

    # PyTorch-layout weights, stacked over layers.
    in_w = jnp.stack([jax.random.uniform(keys[2 + 4 * l], (3 * d_model, d_model),
                                         jnp.float32, -initrange, initrange)
                      for l in range(L)])                        # [L, 3D, D]
    out_w = jnp.stack([jax.random.uniform(keys[3 + 4 * l], (d_model, d_model),
                                          jnp.float32, -initrange, initrange)
                       for l in range(L)])                       # [L, D, D]
    w1 = jnp.stack([jax.random.uniform(keys[4 + 4 * l], (d_hid, d_model),
                                       jnp.float32, -initrange, initrange)
                    for l in range(L)])                          # [L, F, D]
    w2 = jnp.stack([jax.random.uniform(keys[5 + 4 * l], (d_model, d_hid),
                                       jnp.float32, -initrange, initrange)
                    for l in range(L)])                          # [L, D, F]

    # Host-side re-layout: every in-kernel contraction becomes [M,K] x [K,N].
    qkv_w = jnp.transpose(in_w, (0, 2, 1))                       # [L, D, 3D]
    out_w_t = jnp.transpose(out_w, (0, 2, 1)).reshape(L, n_heads, hd, d_model)
    w1_t = jnp.transpose(w1, (0, 2, 1))                          # [L, D, F]
    w2_t = jnp.transpose(w2, (0, 2, 1))                          # [L, F, D]

    params['layers'] = {
        'ln1_g': jnp.ones((L, 1, d_model), jnp.float32),
        'ln1_b': jnp.zeros((L, 1, d_model), jnp.float32),
        'qkv_w': qkv_w,
        'qkv_b': jnp.zeros((L, 1, 3 * d_model), jnp.float32),
        'out_w': out_w_t,                                        # [L, H, hd, D]
        'out_b': jnp.zeros((L, 1, d_model), jnp.float32),
        'ln2_g': jnp.ones((L, 1, d_model), jnp.float32),
        'ln2_b': jnp.zeros((L, 1, d_model), jnp.float32),
        'w1': w1_t, 'b1': jnp.zeros((L, 1, d_hid), jnp.float32),
        'w2': w2_t, 'b2': jnp.zeros((L, 1, d_model), jnp.float32),
    }
    return params


@functools.partial(jax.jit, static_argnames=("d_model", "n_heads"))
def transformer_lm_forward(src, src_mask, params, d_model, n_heads):
    """src: [B, S] int32; src_mask: [S, S] additive causal mask. Returns [B, S, V]."""
    B, S = src.shape
    # Embedding lookup + scale + positional encoding (plain-JAX glue).
    x = params['embedding'][src] * math.sqrt(d_model)        # [B, S, D]
    pe = make_positional_encoding(S, d_model)                 # [S, D]
    x = x + pe[None, :, :]
    # Dropout p=0.0 -> identity.
    # The encoder kernel rebuilds the causal mask in-VMEM via iota (saves the
    # [S,S] f32 stream); src_mask is therefore unused here.
    # TODO(synk): arbitrary (non-causal) src_mask would need a streamed mask input.
    del src_mask
    x = run_encoder_stack(x, params['layers'], n_heads)
    logits = run_decoder(x, params['dec_w_t'], params['dec_b'])   # [B, S, V]
    return logits


# ---------------------------------- main -------------------------------------

if __name__ == "__main__":
    n_tokens, d_model, n_heads, d_hid, n_layers = 32, 32, 2, 64, 2
    batch, seq = 2, 8

    key = jax.random.PRNGKey(0)
    k_param, k_src = jax.random.split(key)
    params = init_params(k_param, n_tokens, d_model, n_heads, d_hid, n_layers)

    src = jax.random.randint(k_src, (batch, seq), 0, n_tokens, dtype=jnp.int32)
    src_mask = generate_square_subsequent_mask(seq)

    out = transformer_lm_forward(src, src_mask, params,
                                 d_model=d_model, n_heads=n_heads)
    out = jax.block_until_ready(out)
    assert out.shape == (batch, seq, n_tokens)
    assert bool(jnp.all(jnp.isfinite(out)))
    print("KERNEL_OK")
</pallas_src>

<mosaic_0001>
module attributes {stable_mosaic.version = 11 : i64} {
  func.func @decoder_kernel(%arg0: i32, %arg1: i32, %arg2: memref<16x32xf32, #tpu.memory_space<vmem>>, %arg3: memref<32x128xf32, #tpu.memory_space<vmem>>, %arg4: memref<1x128xf32, #tpu.memory_space<vmem>>, %arg5: memref<16x128xf32, #tpu.memory_space<vmem>>) attributes {dimension_semantics = [#tpu.dimension_semantics<parallel>, #tpu.dimension_semantics<parallel>], iteration_bounds = array<i64: 1, 1>, scalar_prefetch = 0 : i64, scratch_operands = 0 : i64, tpu.core_type = #tpu.core_type<tc>, window_params = [{transform_indices = @transform_0, window_bounds = array<i64: 16, 32>}, {transform_indices = @transform_1, window_bounds = array<i64: 32, 128>}, {transform_indices = @transform_2, window_bounds = array<i64: 1, 128>}, {transform_indices = @transform_3, window_bounds = array<i64: 16, 128>}]} {
    %c0 = arith.constant 0 : index
    %c0_0 = arith.constant 0 : index
    %0 = vector.load %arg2[%c0, %c0_0] : memref<16x32xf32, #tpu.memory_space<vmem>>, vector<16x32xf32>
    %c0_1 = arith.constant 0 : index
    %c0_2 = arith.constant 0 : index
    %1 = vector.load %arg3[%c0_1, %c0_2] : memref<32x128xf32, #tpu.memory_space<vmem>>, vector<32x128xf32>
    %cst = arith.constant dense<0.000000e+00> : vector<16x128xf32>
    %2 = tpu.matmul %0, %1, %cst {dimension_numbers = #tpu.dot_dimension_numbers<[1], [0], [0], [1], [0, 0, 1, 1], [], []>} : vector<16x32xf32>, vector<32x128xf32>, vector<16x128xf32> -> vector<16x128xf32>
    %c0_3 = arith.constant 0 : index
    %c0_4 = arith.constant 0 : index
    %3 = vector.load %arg4[%c0_3, %c0_4] : memref<1x128xf32, #tpu.memory_space<vmem>>, vector<1x128xf32>
    %4 = vector.broadcast %3 : vector<1x128xf32> to vector<16x128xf32>
    %5 = arith.addf %2, %4 : vector<16x128xf32>
    %c0_5 = arith.constant 0 : index
    %c0_6 = arith.constant 0 : index
    %6 = vector.load %arg5[%c0_5, %c0_6] : memref<16x128xf32, #tpu.memory_space<vmem>>, vector<16x128xf32>
    tpu.vector_store %arg5[%c0_5, %c0_6], %5 {strides = array<i32>} : memref<16x128xf32, #tpu.memory_space<vmem>>, vector<16x128xf32>,
    return
  }
  func.func @transform_0(%arg0: i32, %arg1: i32) -> (i32, i32) {
    %c0_i32 = arith.constant 0 : i32
    %c0_i32_0 = arith.constant 0 : i32
    return %arg0, %c0_i32 : i32, i32
  }
  func.func @transform_1(%arg0: i32, %arg1: i32) -> (i32, i32) {
    %c0_i32 = arith.constant 0 : i32
    %c0_i32_0 = arith.constant 0 : i32
    return %c0_i32, %arg1 : i32, i32
  }
  func.func @transform_2(%arg0: i32, %arg1: i32) -> (i32, i32) {
    %c0_i32 = arith.constant 0 : i32
    %c0_i32_0 = arith.constant 0 : i32
    return %c0_i32, %arg1 : i32, i32
  }
  func.func @transform_3(%arg0: i32, %arg1: i32) -> (i32, i32) {
    %c0_i32 = arith.constant 0 : i32
    return %arg0, %arg1 : i32, i32
  }
}

module attributes {stable_mosaic.version = 11 : i64} {
  func.func @encoder_stack_kernel(%arg0: i32, %arg1: i32, %arg2: memref<2x8x32xf32, #tpu.memory_space<vmem>>, %arg3: memref<1x1x32xf32, #tpu.memory_space<vmem>>, %arg4: memref<1x1x32xf32, #tpu.memory_space<vmem>>, %arg5: memref<1x32x96xf32, #tpu.memory_space<vmem>>, %arg6: memref<1x1x96xf32, #tpu.memory_space<vmem>>, %arg7: memref<1x2x16x32xf32, #tpu.memory_space<vmem>>, %arg8: memref<1x1x32xf32, #tpu.memory_space<vmem>>, %arg9: memref<1x1x32xf32, #tpu.memory_space<vmem>>, %arg10: memref<1x1x32xf32, #tpu.memory_space<vmem>>, %arg11: memref<1x32x64xf32, #tpu.memory_space<vmem>>, %arg12: memref<1x1x64xf32, #tpu.memory_space<vmem>>, %arg13: memref<1x64x32xf32, #tpu.memory_space<vmem>>, %arg14: memref<1x1x32xf32, #tpu.memory_space<vmem>>, %arg15: memref<2x8x32xf32, #tpu.memory_space<vmem>>) attributes {dimension_semantics = [#tpu.dimension_semantics<parallel>, #tpu.dimension_semantics<arbitrary>], iteration_bounds = array<i64: 1, 2>, scalar_prefetch = 0 : i64, scratch_operands = 0 : i64, tpu.core_type = #tpu.core_type<tc>, window_params = [{transform_indices = @transform_0, window_bounds = array<i64: 2, 8, 32>}, {transform_indices = @transform_1, window_bounds = array<i64: 1, 1, 32>}, {transform_indices = @transform_2, window_bounds = array<i64: 1, 1, 32>}, {transform_indices = @transform_3, window_bounds = array<i64: 1, 32, 96>}, {transform_indices = @transform_4, window_bounds = array<i64: 1, 1, 96>}, {transform_indices = @transform_5, window_bounds = array<i64: 1, 2, 16, 32>}, {transform_indices = @transform_6, window_bounds = array<i64: 1, 1, 32>}, {transform_indices = @transform_7, window_bounds = array<i64: 1, 1, 32>}, {transform_indices = @transform_8, window_bounds = array<i64: 1, 1, 32>}, {transform_indices = @transform_9, window_bounds = array<i64: 1, 32, 64>}, {transform_indices = @transform_10, window_bounds = array<i64: 1, 1, 64>}, {transform_indices = @transform_11, window_bounds = array<i64: 1, 64, 32>}, {transform_indices = @transform_12, window_bounds = array<i64: 1, 1, 32>}, {transform_indices = @transform_13, window_bounds = array<i64: 2, 8, 32>}]} {
    %c0_i32 = arith.constant 0 : i32
    %0 = arith.cmpi eq, %arg1, %c0_i32 : i32
    %1 = arith.extui %0 : i1 to i32
    %c0_i32_0 = arith.constant 0 : i32
    %2 = arith.cmpi ne, %1, %c0_i32_0 : i32
    scf.if %2 {
      %c0_73 = arith.constant 0 : index
      %c0_74 = arith.constant 0 : index
      %c0_75 = arith.constant 0 : index
      %148 = vector.load %arg2[%c0_73, %c0_74, %c0_75] : memref<2x8x32xf32, #tpu.memory_space<vmem>>, vector<2x8x32xf32>
      %c0_76 = arith.constant 0 : index
      %c0_77 = arith.constant 0 : index
      %c0_78 = arith.constant 0 : index
      %149 = vector.load %arg15[%c0_76, %c0_77, %c0_78] : memref<2x8x32xf32, #tpu.memory_space<vmem>>, vector<2x8x32xf32>
      tpu.vector_store %arg15[%c0_76, %c0_77, %c0_78], %148 {strides = array<i32>} : memref<2x8x32xf32, #tpu.memory_space<vmem>>, vector<2x8x32xf32>,
    } else {
    }
    %c0 = arith.constant 0 : index
    %c0_1 = arith.constant 0 : index
    %c0_2 = arith.constant 0 : index
    %3 = vector.load %arg15[%c0, %c0_1, %c0_2] : memref<2x8x32xf32, #tpu.memory_space<vmem>>, vector<2x8x32xf32>
    %4 = vector.shape_cast %3 : vector<2x8x32xf32> to vector<16x32xf32>
    %c0_3 = arith.constant 0 : index
    %c0_4 = arith.constant 0 : index
    %c0_5 = arith.constant 0 : index
    %5 = vector.load %arg3[%c0_3, %c0_4, %c0_5] : memref<1x1x32xf32, #tpu.memory_space<vmem>>, vector<1x1x32xf32>
    %6 = vector.shape_cast %5 : vector<1x1x32xf32> to vector<1x32xf32>
    %c0_6 = arith.constant 0 : index
    %c0_7 = arith.constant 0 : index
    %c0_8 = arith.constant 0 : index
    %7 = vector.load %arg4[%c0_6, %c0_7, %c0_8] : memref<1x1x32xf32, #tpu.memory_space<vmem>>, vector<1x1x32xf32>
    %8 = vector.shape_cast %7 : vector<1x1x32xf32> to vector<1x32xf32>
    %cst = arith.constant dense<0.000000e+00> : vector<16xf32>
    %9 = vector.multi_reduction <add>, %4, %cst [1] : vector<16x32xf32> to vector<16xf32>
    %10 = vector.shape_cast %9 : vector<16xf32> to vector<16x1xf32>
    %cst_9 = arith.constant 3.200000e+01 : f32
    %11 = vector.broadcast %cst_9 : f32 to vector<16x1xf32>
    %12 = arith.divf %10, %11 : vector<16x1xf32>
    %13 = vector.broadcast %12 : vector<16x1xf32> to vector<16x32xf32>
    %14 = arith.subf %4, %13 : vector<16x32xf32>
    %15 = arith.mulf %14, %14 : vector<16x32xf32>
    %cst_10 = arith.constant dense<0.000000e+00> : vector<16xf32>
    %16 = vector.multi_reduction <add>, %15, %cst_10 [1] : vector<16x32xf32> to vector<16xf32>
    %17 = vector.shape_cast %16 : vector<16xf32> to vector<16x1xf32>
    %cst_11 = arith.constant 3.200000e+01 : f32
    %18 = vector.broadcast %cst_11 : f32 to vector<16x1xf32>
    %19 = arith.divf %17, %18 : vector<16x1xf32>
    %20 = vector.broadcast %12 : vector<16x1xf32> to vector<16x32xf32>
    %21 = arith.subf %4, %20 : vector<16x32xf32>
    %cst_12 = arith.constant 9.99999974E-6 : f32
    %22 = vector.broadcast %cst_12 : f32 to vector<16x1xf32>
    %23 = arith.addf %19, %22 : vector<16x1xf32>
    %24 = math.rsqrt %23 : vector<16x1xf32>
    %25 = vector.broadcast %24 : vector<16x1xf32> to vector<16x32xf32>
    %26 = arith.mulf %21, %25 : vector<16x32xf32>
    %27 = vector.broadcast %6 : vector<1x32xf32> to vector<16x32xf32>
    %28 = arith.mulf %26, %27 : vector<16x32xf32>
    %29 = vector.broadcast %8 : vector<1x32xf32> to vector<16x32xf32>
    %30 = arith.addf %28, %29 : vector<16x32xf32>
    %c0_13 = arith.constant 0 : index
    %c0_14 = arith.constant 0 : index
    %c0_15 = arith.constant 0 : index
    %31 = vector.load %arg5[%c0_13, %c0_14, %c0_15] : memref<1x32x96xf32, #tpu.memory_space<vmem>>, vector<1x32x96xf32>
    %32 = vector.shape_cast %31 : vector<1x32x96xf32> to vector<32x96xf32>
    %cst_16 = arith.constant dense<0.000000e+00> : vector<16x96xf32>
    %33 = tpu.matmul %30, %32, %cst_16 {dimension_numbers = #tpu.dot_dimension_numbers<[1], [0], [0], [1], [0, 0, 1, 1], [], []>} : vector<16x32xf32>, vector<32x96xf32>, vector<16x96xf32> -> vector<16x96xf32>
    %c0_17 = arith.constant 0 : index
    %c0_18 = arith.constant 0 : index
    %c0_19 = arith.constant 0 : index
    %34 = vector.load %arg6[%c0_17, %c0_18, %c0_19] : memref<1x1x96xf32, #tpu.memory_space<vmem>>, vector<1x1x96xf32>
    %35 = vector.shape_cast %34 : vector<1x1x96xf32> to vector<1x96xf32>
    %36 = vector.broadcast %35 : vector<1x96xf32> to vector<16x96xf32>
    %37 = arith.addf %33, %36 : vector<16x96xf32>
    %38 = vector.extract_strided_slice %37 {offsets = [0, 0], sizes = [16, 32], strides = [1, 1]} : vector<16x96xf32> to vector<16x32xf32>
    %cst_20 = arith.constant 2.500000e-01 : f32
    %39 = vector.broadcast %cst_20 : f32 to vector<16x32xf32>
    %40 = arith.mulf %38, %39 : vector<16x32xf32>
    %41 = vector.extract_strided_slice %37 {offsets = [0, 32], sizes = [16, 32], strides = [1, 1]} : vector<16x96xf32> to vector<16x32xf32>
    %42 = vector.extract_strided_slice %37 {offsets = [0, 64], sizes = [16, 32], strides = [1, 1]} : vector<16x96xf32> to vector<16x32xf32>
    %43 = tpu.iota {dimensions = array<i32: 0>} : vector<8x8xi32>
    %44 = tpu.iota {dimensions = array<i32: 1>} : vector<8x8xi32>
    %45 = arith.cmpi sgt, %44, %43 : vector<8x8xi32>
    %cst_21 = arith.constant 0xFF800000 : f32
    %cst_22 = arith.constant 0.000000e+00 : f32
    %46 = vector.broadcast %cst_21 : f32 to vector<8x8xf32>
    %47 = vector.broadcast %cst_22 : f32 to vector<8x8xf32>
    %48 = arith.select %45, %46, %47 : vector<8x8xi1>, vector<8x8xf32>
    %49 = vector.shape_cast %48 : vector<8x8xf32> to vector<1x8x8xf32>
    %50 = vector.broadcast %49 : vector<1x8x8xf32> to vector<2x8x8xf32>
    %cst_23 = arith.constant 0.000000e+00 : f32
    %51 = vector.broadcast %cst_23 : f32 to vector<16x32xf32>
    %52 = vector.extract_strided_slice %40 {offsets = [0, 0], sizes = [16, 16], strides = [1, 1]} : vector<16x32xf32> to vector<16x16xf32>
    %53 = vector.shape_cast %52 : vector<16x16xf32> to vector<2x8x16xf32>
    %54 = vector.extract_strided_slice %41 {offsets = [0, 0], sizes = [16, 16], strides = [1, 1]} : vector<16x32xf32> to vector<16x16xf32>
    %55 = vector.shape_cast %54 : vector<16x16xf32> to vector<2x8x16xf32>
    %56 = vector.extract_strided_slice %42 {offsets = [0, 0], sizes = [16, 16], strides = [1, 1]} : vector<16x32xf32> to vector<16x16xf32>
    %57 = vector.shape_cast %56 : vector<16x16xf32> to vector<2x8x16xf32>
    "tpu.trace_start"() <{level = 10 : i32, message = "bqe,bke->bqk"}> : () -> ()
    %cst_24 = arith.constant dense<0.000000e+00> : vector<2x8x8xf32>
    %58 = tpu.matmul %53, %55, %cst_24 {dimension_numbers = #tpu.dot_dimension_numbers<[2], [2], [1], [1], [0, 0, 0, 1, 1, 1], [0], [0]>} : vector<2x8x16xf32>, vector<2x8x16xf32>, vector<2x8x8xf32> -> vector<2x8x8xf32>
    "tpu.trace_stop"() : () -> ()
    %59 = arith.addf %58, %50 : vector<2x8x8xf32>
    %cst_25 = arith.constant dense<0xFF800000> : vector<2x8xf32>
    %60 = vector.multi_reduction <maximumf>, %59, %cst_25 [2] : vector<2x8x8xf32> to vector<2x8xf32>
    %61 = vector.shape_cast %60 : vector<2x8xf32> to vector<2x8x1xf32>
    %62 = vector.broadcast %61 : vector<2x8x1xf32> to vector<2x8x8xf32>
    %63 = arith.subf %59, %62 : vector<2x8x8xf32>
    %64 = math.exp %63 : vector<2x8x8xf32>
    %cst_26 = arith.constant dense<0.000000e+00> : vector<2x8xf32>
    %65 = vector.multi_reduction <add>, %64, %cst_26 [2] : vector<2x8x8xf32> to vector<2x8xf32>
    %66 = vector.shape_cast %65 : vector<2x8xf32> to vector<2x8x1xf32>
    %67 = vector.broadcast %66 : vector<2x8x1xf32> to vector<2x8x8xf32>
    %68 = arith.divf %64, %67 : vector<2x8x8xf32>
    "tpu.trace_start"() <{level = 10 : i32, message = "bqk,bke->bqe"}> : () -> ()
    %cst_27 = arith.constant dense<0.000000e+00> : vector<2x8x16xf32>
    %69 = tpu.matmul %68, %57, %cst_27 {dimension_numbers = #tpu.dot_dimension_numbers<[2], [1], [1], [2], [0, 0, 0, 1, 1, 2], [0], [0]>} : vector<2x8x8xf32>, vector<2x8x16xf32>, vector<2x8x16xf32> -> vector<2x8x16xf32>
    "tpu.trace_stop"() : () -> ()
    %70 = vector.shape_cast %69 : vector<2x8x16xf32> to vector<16x16xf32>
    %c0_28 = arith.constant 0 : index
    %c0_29 = arith.constant 0 : index
    %c0_30 = arith.constant 0 : index
    %c0_31 = arith.constant 0 : index
    %71 = vector.load %arg7[%c0_28, %c0_29, %c0_30, %c0_31] : memref<1x2x16x32xf32, #tpu.memory_space<vmem>>, vector<1x1x16x32xf32>
    %72 = vector.shape_cast %71 : vector<1x1x16x32xf32> to vector<16x32xf32>
    %cst_32 = arith.constant dense<0.000000e+00> : vector<16x32xf32>
    %73 = tpu.matmul %70, %72, %cst_32 {dimension_numbers = #tpu.dot_dimension_numbers<[1], [0], [0], [1], [0, 0, 1, 1], [], []>} : vector<16x16xf32>, vector<16x32xf32>, vector<16x32xf32> -> vector<16x32xf32>
    %74 = arith.addf %51, %73 : vector<16x32xf32>
    %75 = vector.extract_strided_slice %40 {offsets = [0, 16], sizes = [16, 16], strides = [1, 1]} : vector<16x32xf32> to vector<16x16xf32>
    %76 = vector.shape_cast %75 : vector<16x16xf32> to vector<2x8x16xf32>
    %77 = vector.extract_strided_slice %41 {offsets = [0, 16], sizes = [16, 16], strides = [1, 1]} : vector<16x32xf32> to vector<16x16xf32>
    %78 = vector.shape_cast %77 : vector<16x16xf32> to vector<2x8x16xf32>
    %79 = vector.extract_strided_slice %42 {offsets = [0, 16], sizes = [16, 16], strides = [1, 1]} : vector<16x32xf32> to vector<16x16xf32>
    %80 = vector.shape_cast %79 : vector<16x16xf32> to vector<2x8x16xf32>
    "tpu.trace_start"() <{level = 10 : i32, message = "bqe,bke->bqk"}> : () -> ()
    %cst_33 = arith.constant dense<0.000000e+00> : vector<2x8x8xf32>
    %81 = tpu.matmul %76, %78, %cst_33 {dimension_numbers = #tpu.dot_dimension_numbers<[2], [2], [1], [1], [0, 0, 0, 1, 1, 1], [0], [0]>} : vector<2x8x16xf32>, vector<2x8x16xf32>, vector<2x8x8xf32> -> vector<2x8x8xf32>
    "tpu.trace_stop"() : () -> ()
    %82 = arith.addf %81, %50 : vector<2x8x8xf32>
    %cst_34 = arith.constant dense<0xFF800000> : vector<2x8xf32>
    %83 = vector.multi_reduction <maximumf>, %82, %cst_34 [2] : vector<2x8x8xf32> to vector<2x8xf32>
    %84 = vector.shape_cast %83 : vector<2x8xf32> to vector<2x8x1xf32>
    %85 = vector.broadcast %84 : vector<2x8x1xf32> to vector<2x8x8xf32>
    %86 = arith.subf %82, %85 : vector<2x8x8xf32>
    %87 = math.exp %86 : vector<2x8x8xf32>
    %cst_35 = arith.constant dense<0.000000e+00> : vector<2x8xf32>
    %88 = vector.multi_reduction <add>, %87, %cst_35 [2] : vector<2x8x8xf32> to vector<2x8xf32>
    %89 = vector.shape_cast %88 : vector<2x8xf32> to vector<2x8x1xf32>
    %90 = vector.broadcast %89 : vector<2x8x1xf32> to vector<2x8x8xf32>
    %91 = arith.divf %87, %90 : vector<2x8x8xf32>
    "tpu.trace_start"() <{level = 10 : i32, message = "bqk,bke->bqe"}> : () -> ()
    %cst_36 = arith.constant dense<0.000000e+00> : vector<2x8x16xf32>
    %92 = tpu.matmul %91, %80, %cst_36 {dimension_numbers = #tpu.dot_dimension_numbers<[2], [1], [1], [2], [0, 0, 0, 1, 1, 2], [0], [0]>} : vector<2x8x8xf32>, vector<2x8x16xf32>, vector<2x8x16xf32> -> vector<2x8x16xf32>
    "tpu.trace_stop"() : () -> ()
    %93 = vector.shape_cast %92 : vector<2x8x16xf32> to vector<16x16xf32>
    %c0_37 = arith.constant 0 : index
    %c1 = arith.constant 1 : index
    %c0_38 = arith.constant 0 : index
    %c0_39 = arith.constant 0 : index
    %94 = vector.load %arg7[%c0_37, %c1, %c0_38, %c0_39] : memref<1x2x16x32xf32, #tpu.memory_space<vmem>>, vector<1x1x16x32xf32>
    %95 = vector.shape_cast %94 : vector<1x1x16x32xf32> to vector<16x32xf32>
    %cst_40 = arith.constant dense<0.000000e+00> : vector<16x32xf32>
    %96 = tpu.matmul %93, %95, %cst_40 {dimension_numbers = #tpu.dot_dimension_numbers<[1], [0], [0], [1], [0, 0, 1, 1], [], []>} : vector<16x16xf32>, vector<16x32xf32>, vector<16x32xf32> -> vector<16x32xf32>
    %97 = arith.addf %74, %96 : vector<16x32xf32>
    %98 = arith.addf %4, %97 : vector<16x32xf32>
    %c0_41 = arith.constant 0 : index
    %c0_42 = arith.constant 0 : index
    %c0_43 = arith.constant 0 : index
    %99 = vector.load %arg8[%c0_41, %c0_42, %c0_43] : memref<1x1x32xf32, #tpu.memory_space<vmem>>, vector<1x1x32xf32>
    %100 = vector.shape_cast %99 : vector<1x1x32xf32> to vector<1x32xf32>
    %101 = vector.broadcast %100 : vector<1x32xf32> to vector<16x32xf32>
    %102 = arith.addf %98, %101 : vector<16x32xf32>
    %c0_44 = arith.constant 0 : index
    %c0_45 = arith.constant 0 : index
    %c0_46 = arith.constant 0 : index
    %103 = vector.load %arg9[%c0_44, %c0_45, %c0_46] : memref<1x1x32xf32, #tpu.memory_space<vmem>>, vector<1x1x32xf32>
    %104 = vector.shape_cast %103 : vector<1x1x32xf32> to vector<1x32xf32>
    %c0_47 = arith.constant 0 : index
    %c0_48 = arith.constant 0 : index
    %c0_49 = arith.constant 0 : index
    %105 = vector.load %arg10[%c0_47, %c0_48, %c0_49] : memref<1x1x32xf32, #tpu.memory_space<vmem>>, vector<1x1x32xf32>
    %106 = vector.shape_cast %105 : vector<1x1x32xf32> to vector<1x32xf32>
    %cst_50 = arith.constant dense<0.000000e+00> : vector<16xf32>
    %107 = vector.multi_reduction <add>, %102, %cst_50 [1] : vector<16x32xf32> to vector<16xf32>
    %108 = vector.shape_cast %107 : vector<16xf32> to vector<16x1xf32>
    %cst_51 = arith.constant 3.200000e+01 : f32
    %109 = vector.broadcast %cst_51 : f32 to vector<16x1xf32>
    %110 = arith.divf %108, %109 : vector<16x1xf32>
    %111 = vector.broadcast %110 : vector<16x1xf32> to vector<16x32xf32>
    %112 = arith.subf %102, %111 : vector<16x32xf32>
    %113 = arith.mulf %112, %112 : vector<16x32xf32>
    %cst_52 = arith.constant dense<0.000000e+00> : vector<16xf32>
    %114 = vector.multi_reduction <add>, %113, %cst_52 [1] : vector<16x32xf32> to vector<16xf32>
    %115 = vector.shape_cast %114 : vector<16xf32> to vector<16x1xf32>
    %cst_53 = arith.constant 3.200000e+01 : f32
    %116 = vector.broadcast %cst_53 : f32 to vector<16x1xf32>
    %117 = arith.divf %115, %116 : vector<16x1xf32>
    %118 = vector.broadcast %110 : vector<16x1xf32> to vector<16x32xf32>
    %119 = arith.subf %102, %118 : vector<16x32xf32>
    %cst_54 = arith.constant 9.99999974E-6 : f32
    %120 = vector.broadcast %cst_54 : f32 to vector<16x1xf32>
    %121 = arith.addf %117, %120 : vector<16x1xf32>
    %122 = math.rsqrt %121 : vector<16x1xf32>
    %123 = vector.broadcast %122 : vector<16x1xf32> to vector<16x32xf32>
    %124 = arith.mulf %119, %123 : vector<16x32xf32>
    %125 = vector.broadcast %104 : vector<1x32xf32> to vector<16x32xf32>
    %126 = arith.mulf %124, %125 : vector<16x32xf32>
    %127 = vector.broadcast %106 : vector<1x32xf32> to vector<16x32xf32>
    %128 = arith.addf %126, %127 : vector<16x32xf32>
    %c0_55 = arith.constant 0 : index
    %c0_56 = arith.constant 0 : index
    %c0_57 = arith.constant 0 : index
    %129 = vector.load %arg11[%c0_55, %c0_56, %c0_57] : memref<1x32x64xf32, #tpu.memory_space<vmem>>, vector<1x32x64xf32>
    %130 = vector.shape_cast %129 : vector<1x32x64xf32> to vector<32x64xf32>
    %cst_58 = arith.constant dense<0.000000e+00> : vector<16x64xf32>
    %131 = tpu.matmul %128, %130, %cst_58 {dimension_numbers = #tpu.dot_dimension_numbers<[1], [0], [0], [1], [0, 0, 1, 1], [], []>} : vector<16x32xf32>, vector<32x64xf32>, vector<16x64xf32> -> vector<16x64xf32>
    %c0_59 = arith.constant 0 : index
    %c0_60 = arith.constant 0 : index
    %c0_61 = arith.constant 0 : index
    %132 = vector.load %arg12[%c0_59, %c0_60, %c0_61] : memref<1x1x64xf32, #tpu.memory_space<vmem>>, vector<1x1x64xf32>
    %133 = vector.shape_cast %132 : vector<1x1x64xf32> to vector<1x64xf32>
    %134 = vector.broadcast %133 : vector<1x64xf32> to vector<16x64xf32>
    %135 = arith.addf %131, %134 : vector<16x64xf32>
    %cst_62 = arith.constant 0.000000e+00 : f32
    %136 = vector.broadcast %cst_62 : f32 to vector<16x64xf32>
    %137 = arith.maximumf %135, %136 : vector<16x64xf32>
    %c0_63 = arith.constant 0 : index
    %c0_64 = arith.constant 0 : index
    %c0_65 = arith.constant 0 : index
    %138 = vector.load %arg13[%c0_63, %c0_64, %c0_65] : memref<1x64x32xf32, #tpu.memory_space<vmem>>, vector<1x64x32xf32>
    %139 = vector.shape_cast %138 : vector<1x64x32xf32> to vector<64x32xf32>
    %cst_66 = arith.constant dense<0.000000e+00> : vector<16x32xf32>
    %140 = tpu.matmul %137, %139, %cst_66 {dimension_numbers = #tpu.dot_dimension_numbers<[1], [0], [0], [1], [0, 0, 1, 1], [], []>} : vector<16x64xf32>, vector<64x32xf32>, vector<16x32xf32> -> vector<16x32xf32>
    %c0_67 = arith.constant 0 : index
    %c0_68 = arith.constant 0 : index
    %c0_69 = arith.constant 0 : index
    %141 = vector.load %arg14[%c0_67, %c0_68, %c0_69] : memref<1x1x32xf32, #tpu.memory_space<vmem>>, vector<1x1x32xf32>
    %142 = vector.shape_cast %141 : vector<1x1x32xf32> to vector<1x32xf32>
    %143 = vector.broadcast %142 : vector<1x32xf32> to vector<16x32xf32>
    %144 = arith.addf %140, %143 : vector<16x32xf32>
    %145 = arith.addf %102, %144 : vector<16x32xf32>
    %146 = vector.shape_cast %145 : vector<16x32xf32> to vector<2x8x32xf32>
    %c0_70 = arith.constant 0 : index
    %c0_71 = arith.constant 0 : index
    %c0_72 = arith.constant 0 : index
    %147 = vector.load %arg15[%c0_70, %c0_71, %c0_72] : memref<2x8x32xf32, #tpu.memory_space<vmem>>, vector<2x8x32xf32>
    tpu.vector_store %arg15[%c0_70, %c0_71, %c0_72], %146 {strides = array<i32>} : memref<2x8x32xf32, #tpu.memory_space<vmem>>, vector<2x8x32xf32>,
    return
  }
  func.func @transform_0(%arg0: i32, %arg1: i32) -> (i32, i32, i32) {
    %c0_i32 = arith.constant 0 : i32
    %c0_i32_0 = arith.constant 0 : i32
    %c0_i32_1 = arith.constant 0 : i32
    return %arg0, %c0_i32, %c0_i32_0 : i32, i32, i32
  }
  func.func @transform_1(%arg0: i32, %arg1: i32) -> (i32, i32, i32) {
    %c0_i32 = arith.constant 0 : i32
    %c0_i32_0 = arith.constant 0 : i32
    %c0_i32_1 = arith.constant 0 : i32
    return %arg1, %c0_i32, %c0_i32_0 : i32, i32, i32
  }
  func.func @transform_2(%arg0: i32, %arg1: i32) -> (i32, i32, i32) {
    %c0_i32 = arith.constant 0 : i32
    %c0_i32_0 = arith.constant 0 : i32
    %c0_i32_1 = arith.constant 0 : i32
    return %arg1, %c0_i32, %c0_i32_0 : i32, i32, i32
  }
  func.func @transform_3(%arg0: i32, %arg1: i32) -> (i32, i32, i32) {
    %c0_i32 = arith.constant 0 : i32
    %c0_i32_0 = arith.constant 0 : i32
    %c0_i32_1 = arith.constant 0 : i32
    return %arg1, %c0_i32, %c0_i32_0 : i32, i32, i32
  }
  func.func @transform_4(%arg0: i32, %arg1: i32) -> (i32, i32, i32) {
    %c0_i32 = arith.constant 0 : i32
    %c0_i32_0 = arith.constant 0 : i32
    %c0_i32_1 = arith.constant 0 : i32
    return %arg1, %c0_i32, %c0_i32_0 : i32, i32, i32
  }
  func.func @transform_5(%arg0: i32, %arg1: i32) -> (i32, i32, i32, i32) {
    %c0_i32 = arith.constant 0 : i32
    %c0_i32_0 = arith.constant 0 : i32
    %c0_i32_1 = arith.constant 0 : i32
    %c0_i32_2 = arith.constant 0 : i32
    return %arg1, %c0_i32, %c0_i32_0, %c0_i32_1 : i32, i32, i32, i32
  }
  func.func @transform_6(%arg0: i32, %arg1: i32) -> (i32, i32, i32) {
    %c0_i32 = arith.constant 0 : i32
    %c0_i32_0 = arith.constant 0 : i32
    %c0_i32_1 = arith.constant 0 : i32
    return %arg1, %c0_i32, %c0_i32_0 : i32, i32, i32
  }
  func.func @transform_7(%arg0: i32, %arg1: i32) -> (i32, i32, i32) {
    %c0_i32 = arith.constant 0 : i32
    %c0_i32_0 = arith.constant 0 : i32
    %c0_i32_1 = arith.constant 0 : i32
    return %arg1, %c0_i32, %c0_i32_0 : i32, i32, i32
  }
  func.func @transform_8(%arg0: i32, %arg1: i32) -> (i32, i32, i32) {
    %c0_i32 = arith.constant 0 : i32
    %c0_i32_0 = arith.constant 0 : i32
    %c0_i32_1 = arith.constant 0 : i32
    return %arg1, %c0_i32, %c0_i32_0 : i32, i32, i32
  }
  func.func @transform_9(%arg0: i32, %arg1: i32) -> (i32, i32, i32) {
    %c0_i32 = arith.constant 0 : i32
    %c0_i32_0 = arith.constant 0 : i32
    %c0_i32_1 = arith.constant 0 : i32
    return %arg1, %c0_i32, %c0_i32_0 : i32, i32, i32
  }
  func.func @transform_10(%arg0: i32, %arg1: i32) -> (i32, i32, i32) {
    %c0_i32 = arith.constant 0 : i32
    %c0_i32_0 = arith.constant 0 : i32
    %c0_i32_1 = arith.constant 0 : i32
    return %arg1, %c0_i32, %c0_i32_0 : i32, i32, i32
  }
  func.func @transform_11(%arg0: i32, %arg1: i32) -> (i32, i32, i32) {
    %c0_i32 = arith.constant 0 : i32
    %c0_i32_0 = arith.constant 0 : i32
    %c0_i32_1 = arith.constant 0 : i32
    return %arg1, %c0_i32, %c0_i32_0 : i32, i32, i32
  }
  func.func @transform_12(%arg0: i32, %arg1: i32) -> (i32, i32, i32) {
    %c0_i32 = arith.constant 0 : i32
    %c0_i32_0 = arith.constant 0 : i32
    %c0_i32_1 = arith.constant 0 : i32
    return %arg1, %c0_i32, %c0_i32_0 : i32, i32, i32
  }
  func.func @transform_13(%arg0: i32, %arg1: i32) -> (i32, i32, i32) {
    %c0_i32 = arith.constant 0 : i32
    %c0_i32_0 = arith.constant 0 : i32
    %c0_i32_1 = arith.constant 0 : i32
    return %arg0, %c0_i32, %c0_i32_0 : i32, i32, i32
  }
}

</mosaic_0001>

<llo_original>
// kernel: transformer_lm_forward.3
$region0: #{transformer_lm_forward.3}
  #allocation0 [shape = 'u32[]', space=smem, size = 0x4, offset = 0x4, fixed_abs, tag = 'smem constant byte address 0x4 - core index']
  #allocation1 [shape = 'u32[144,128]{1,0:T(1,128)}', space=vmem, size = 0x12000, scoped, tag = 'internal scratch']
  %s0 = inlined_call_operand.vmem [shape: f32[16,32], index: 0, kind: input, shape index: {}]
  %s1 = inlined_call_operand.vmem [shape: f32[32,128], index: 1, kind: input, shape index: {}]
  %s2 = inlined_call_operand.vmem [shape: f32[1,128], index: 2, kind: input, shape index: {}]
  %s3 = inlined_call_operand.vmem [shape: f32[16,128], index: 3, kind: output, shape index: {}]
  %s4 = sld [smem:[#allocation0]]
  $region22: #{transformer_lm_forward.3} parent=0
    _
  %s6 = ssub.s32 1, %s4
  %s7 = scalar_select 0, %s6, %s4
  // Predicated region
  $region2: #{transformer_lm_forward.3} parent=0 // pred_check
    _
  $region3: #{transformer_lm_forward.3} parent=0 // pred_check_branch
    %9 = sbr.rel (0) target = $region5
  $region4: #{transformer_lm_forward.3} parent=0 // pred_region
    _
  $region5: #{transformer_lm_forward.3} parent=0 // pred_fallthru
    _
  // Predicated region
  $region6: #{transformer_lm_forward.3} parent=0 // pred_check
    _
  $region7: #{transformer_lm_forward.3} parent=0 // pred_check_branch
    %11 = sbr.rel (0) target = $region9
  $region8: #{transformer_lm_forward.3} parent=0 // pred_region
    _
  $region9: #{transformer_lm_forward.3} parent=0 // pred_fallthru
    _
  // Predicated region
  $region10: #{transformer_lm_forward.3} parent=0 // pred_check
    _
  $region11: #{transformer_lm_forward.3} parent=0 // pred_check_branch
    %13 = sbr.rel (0) target = $region13
  $region12: #{transformer_lm_forward.3} parent=0 // pred_region
    _
  $region13: #{transformer_lm_forward.3} parent=0 // pred_fallthru
    _
  %v14 = vld [vmem:[%s0] sm:$0xff]
  %v15 = vld [vmem:[%s0 + $0x8] sm:$0xff]
  %v16 = vld [vmem:[%s1] sm:$0xff]
  %v17 = vld [vmem:[%s1 + $0x8] sm:$0xff]
  %v18 = vld [vmem:[%s1 + $0x10] sm:$0xff]
  %v19 = vld [vmem:[%s1 + $0x18] sm:$0xff]
  %v20 = vld [vmem:[%s2] sm:$0x1]
  %v22 = vlaneseq
  %v23 = vshrl.u32 %v22, 7
  %v24 = vsub.s32 0, %v23
  %v25 = vrot.slane %v20, %v24
  %vm27 = vcmask 261120
  %v29 = vsel %vm27, %v14, 0
  %v32 = vsel %vm27, %v15, 0
  %34 = vmatprep.subr.mxu0 0.0
  %35 = vmatpush1.msra.mxu0 %v16
  %36 = vmatprep.subr.mxu0 0.0
  %37 = vmatpush1.msra.mxu0 %v17
  %38 = vmatprep.subr.mxu0 0.0
  %39 = vmatpush1.msra.mxu0 %v18
  %40 = vmatprep.subr.mxu0 0.0
  %41 = vmatpush1.msra.mxu0 %v19
  %42 = vmatprep.subr.mxu0 0.0
  %43 = vmatpush1.msra.mxu0 0.0
  %44 = vmatprep.subr.mxu0 0.0
  %45 = vmatpush1.msra.mxu0 0.0
  %46 = vmatprep.subr.mxu0 0.0
  %47 = vmatpush1.msra.mxu0 0.0
  %48 = vmatprep.subr.mxu0 0.0
  %49 = vmatpush1.msra.mxu0 0.0
  %50 = vmatprep.subr.mxu0 0.0
  %51 = vmatpush1.msra.mxu0 0.0
  %52 = vmatprep.subr.mxu0 0.0
  %53 = vmatpush1.msra.mxu0 0.0
  %54 = vmatprep.subr.mxu0 0.0
  %55 = vmatpush1.msra.mxu0 0.0
  %56 = vmatprep.subr.mxu0 0.0
  %57 = vmatpush1.msra.mxu0 0.0
  %58 = vmatprep.subr.mxu0 0.0
  %59 = vmatpush1.msra.mxu0 0.0
  %60 = vmatprep.subr.mxu0 0.0
  %61 = vmatpush1.msra.mxu0 0.0
  %62 = vmatprep.subr.mxu0 0.0
  %63 = vmatpush1.msra.mxu0 0.0
  %64 = vmatprep.subr.mxu0 0.0
  %65 = vmatpush1.msra.mxu0 0.0
  %66 = vmatprep.subr.mxu0 0.0
  %67 = vmatpush1.msra.mxu0 0.0
  %68 = vmatprep.subr.mxu0 0.0
  %69 = vmatpush1.msra.mxu0 0.0
  %70 = vmatprep.subr.mxu0 0.0
  %71 = vmatpush1.msra.mxu0 0.0
  %72 = vmatprep.subr.mxu0 0.0
  %73 = vmatpush1.msra.mxu0 0.0
  %74 = vmatprep.subr.mxu0 0.0
  %75 = vmatpush1.msra.mxu0 0.0
  %76 = vmatprep.subr.mxu0 0.0
  %77 = vmatpush1.msra.mxu0 0.0
  %78 = vmatprep.subr.mxu0 0.0
  %79 = vmatpush1.msra.mxu0 0.0
  %80 = vmatprep.subr.mxu0 0.0
  %81 = vmatpush1.msra.mxu0 0.0
  %82 = vmatprep.subr.mxu0 0.0
  %83 = vmatpush1.msra.mxu0 0.0
  %84 = vmatprep.subr.mxu0 0.0
  %85 = vmatpush1.msra.mxu0 0.0
  %86 = vmatprep.subr.mxu0 0.0
  %87 = vmatpush1.msra.mxu0 0.0
  %88 = vmatprep.subr.mxu0 0.0
  %89 = vmatpush1.msra.mxu0 0.0
  %90 = vmatprep.subr.mxu0 0.0
  %91 = vmatpush1.msra.mxu0 0.0
  %92 = vmatprep.subr.mxu0 0.0
  %93 = vmatpush1.msra.mxu0 0.0
  %94 = vmatprep.subr.mxu0 0.0
  %95 = vmatpush1.msra.mxu0 0.0
  %96 = vmatprep.subr.mxu0 0.0
  %97 = vmatpush1.msra.mxu0 0.0
  %98 = vmatprep.mubr.f32.mxu0 0.0
  %99 = vmatmul.mubr.f32.gmra.mrb[0].mxu0 %v29
  %v100 = vpop.f32.mrb[0].mxu0
  %v101 = vadd.f32 %v25, %v100
  %v102 = vpop.f32.mrb[0].mxu0
  %103 = vmatprep.mubr.f32.mxu0 0.0
  %104 = vmatmul.mubr.f32.gmra.mrb[0].mxu0 %v32
  %v105 = vpop.f32.mrb[0].mxu0
  %v106 = vadd.f32 %v25, %v105
  %v107 = vpop.f32.mrb[0].mxu0
  %108 = vdwg.mxu0
  %109 = vst [vmem:[%s3] sm:$0xff] %v101
  %110 = vst [vmem:[%s3 + $0x8] sm:$0xff] %v106
  // Predicated region
  $region14: #{transformer_lm_forward.3} parent=0 // pred_check
    _
  $region15: #{transformer_lm_forward.3} parent=0 // pred_check_branch
    %112 = sbr.rel (0) target = $region17
  $region16: #{transformer_lm_forward.3} parent=0 // pred_region
    _
  $region17: #{transformer_lm_forward.3} parent=0 // pred_fallthru
    _
  // Predicated region
  $region18: #{transformer_lm_forward.3} parent=0 // pred_check
    _
  $region19: #{transformer_lm_forward.3} parent=0 // pred_check_branch
    %114 = sbr.rel (0) target = $region21
  $region20: #{transformer_lm_forward.3} parent=0 // pred_region
    _
  $region21: #{transformer_lm_forward.3} parent=0 // pred_fallthru
    _

// kernel: transformer_lm_forward.2
$region0: #{transformer_lm_forward.2}
  #allocation0 [shape = 'u32[]', space=smem, size = 0x4, offset = 0x4, fixed_abs, tag = 'smem constant byte address 0x4 - core index']
  #allocation1 [shape = 'u32[144,128]{1,0:T(1,128)}', space=vmem, size = 0x12000, scoped, tag = 'internal scratch']
  %s0 = inlined_call_operand.vmem [shape: f32[2,8,32], index: 0, kind: input, shape index: {}, may-alias: {0,13}]
  %s1 = inlined_call_operand.vmem [shape: f32[2,1,32], index: 1, kind: input, shape index: {}]
  %s2 = inlined_call_operand.vmem [shape: f32[2,1,32], index: 2, kind: input, shape index: {}]
  %s3 = inlined_call_operand.vmem [shape: f32[2,32,96], index: 3, kind: input, shape index: {}]
  %s4 = inlined_call_operand.vmem [shape: f32[2,1,96], index: 4, kind: input, shape index: {}]
  %s5 = inlined_call_operand.vmem [shape: f32[2,2,16,32], index: 5, kind: input, shape index: {}]
  %s6 = inlined_call_operand.vmem [shape: f32[2,1,32], index: 6, kind: input, shape index: {}]
  %s7 = inlined_call_operand.vmem [shape: f32[2,1,32], index: 7, kind: input, shape index: {}]
  %s8 = inlined_call_operand.vmem [shape: f32[2,1,32], index: 8, kind: input, shape index: {}]
  %s9 = inlined_call_operand.vmem [shape: f32[2,32,64], index: 9, kind: input, shape index: {}]
  %s10 = inlined_call_operand.vmem [shape: f32[2,1,64], index: 10, kind: input, shape index: {}]
  %s11 = inlined_call_operand.vmem [shape: f32[2,64,32], index: 11, kind: input, shape index: {}]
  %s12 = inlined_call_operand.vmem [shape: f32[2,1,32], index: 12, kind: input, shape index: {}]
  %s13 = inlined_call_operand.vmem [shape: f32[2,8,32], index: 13, kind: output, shape index: {}, may-alias: {0,13}]
  %s14 = sld [smem:[#allocation0]]
  $region89: #{transformer_lm_forward.2} parent=0
    _
  %s16 = ssub.s32 1, %s14
  %s17 = scalar_select 0, %s16, %s14
  loop: start=0, step=1, limit=4
  $region2: #{transformer_lm_forward.2} parent=0 // loop_pre_header
    _
  $region3: #{transformer_lm_forward.2} parent=0 // loop_header
    %s19 = sphi 0, %s23
    %p20 = scmp.ge.s32.totalorder %s19, 4
    %s26 = sphi 0, %s38
    %s27 = sphi 0, %s34
    %s28 = sphi 0, %s26
    %s29 = sphi 0, %s27
    %s30 = sphi 0, %s28
    %s31 = sphi 0, %s29
    %s41 = sphi 0, %s43
    %s44 = sphi 0, %s41
    %s45 = sphi 0, %s44
    %s61 = sphi 0, %s45
    %s67 = sphi 0, %s69
    %s70 = sphi 0, %s67
    %s71 = sphi 0, %s70
    %s87 = sphi 0, %s71
    %s93 = sphi 0, %s95
    %s96 = sphi 0, %s93
    %s97 = sphi 0, %s96
    %s113 = sphi 0, %s97
    %s119 = sphi 0, %s121
    %s122 = sphi 0, %s119
    %s123 = sphi 0, %s122
    %s139 = sphi 0, %s123
    %s145 = sphi 0, %s147
    %s148 = sphi 0, %s145
    %s149 = sphi 0, %s148
    %s165 = sphi 0, %s149
    %s171 = sphi 0, %s173
    %s174 = sphi 0, %s171
    %s175 = sphi 0, %s174
    %s191 = sphi 0, %s175
    %s197 = sphi 0, %s199
    %s200 = sphi 0, %s197
    %s201 = sphi 0, %s200
    %s217 = sphi 0, %s201
    %s223 = sphi 0, %s225
    %s226 = sphi 0, %s223
    %s227 = sphi 0, %s226
    %s243 = sphi 0, %s227
    %s249 = sphi 0, %s251
    %s252 = sphi 0, %s249
    %s253 = sphi 0, %s252
    %s269 = sphi 0, %s253
    %s275 = sphi 0, %s277
    %s278 = sphi 0, %s275
    %s279 = sphi 0, %s278
    %s295 = sphi 0, %s279
    %s301 = sphi 0, %s303
    %s304 = sphi 0, %s301
    %s305 = sphi 0, %s304
    %s321 = sphi 0, %s305
    %s327 = sphi 0, %s329
    %s330 = sphi 0, %s327
    %s331 = sphi 0, %s330
    %s347 = sphi 0, %s331
    %s353 = sphi 0, %s355
    %s356 = sphi 0, %s353
    %s357 = sphi 0, %s356
    %s373 = sphi 0, %s357
    %s379 = sphi 0, %s381
    %s382 = sphi 0, %s379
    %s383 = sphi 0, %s382
    %s399 = sphi 0, %s383
  $region4: #{transformer_lm_forward.2} parent=0 // loop_header_branch
    %22 = sbr.rel (%p20) target = $region8
  $region5: #{transformer_lm_forward.2} parent=0 // loop_body
    %s24 = ssub.s32 %s19, 1
    %s25 = ssub.s32 %s19, 2
    %s32 = sadd.s32 1, %s27
    %p33 = scmp.ge.s32.totalorder %s32, 2
    %s34 = scalar_select %p33, 0, %s32
    %s35 = sadd.s32 1, %s26
    %s36 = scalar_select %p33, %s35, %s26
    %p37 = scmp.ge.s32.totalorder %s36, 1
    %s38 = scalar_select %p37, 0, %s36
    %s39 = ssub.s32 %s26, %s38
    %p40 = scmp.eq.s32.totalorder %s39, 0
    %s42 = sadd.s32 %s41, 1
    %s43 = scalar_select %p40, %s41, %s42
    %p46 = pneg %p40
    %p47 = scmp.eq.s32.totalorder %s19, 1
    %p48 = por %p46, %p47
    %p49 = scmp.ne.s32.totalorder %s41, %s44
    %p50 = scmp.eq.s32.totalorder %s19, 0
    %p51 = por %p49, %p50
    %p52 = scmp.ne.s32.totalorder %s41, %s44
    %p53 = scmp.eq.s32.totalorder %s24, 1
    %p54 = por %p52, %p53
    %p55 = scmp.ne.s32.totalorder %s44, %s45
    %p56 = scmp.eq.s32.totalorder %s24, 0
    %p57 = por %p55, %p56
    %p58 = scmp.ne.s32.totalorder %s44, %s45
    %p59 = scmp.eq.s32.totalorder %s25, 1
    %p60 = por %p58, %p59
    %p62 = scmp.ne.s32.totalorder %s45, %s61
    %p63 = scmp.eq.s32.totalorder %s25, 0
    %p64 = por %p62, %p63
    %s65 = ssub.s32 %s27, %s34
    %p66 = scmp.eq.s32.totalorder %s65, 0
    %s68 = sadd.s32 %s67, 1
    %s69 = scalar_select %p66, %s67, %s68
    %p72 = pneg %p66
    %p73 = scmp.eq.s32.totalorder %s19, 1
    %p74 = por %p72, %p73
    %p75 = scmp.ne.s32.totalorder %s67, %s70
    %p76 = scmp.eq.s32.totalorder %s19, 0
    %p77 = por %p75, %p76
    %p78 = scmp.ne.s32.totalorder %s67, %s70
    %p79 = scmp.eq.s32.totalorder %s24, 1
    %p80 = por %p78, %p79
    %p81 = scmp.ne.s32.totalorder %s70, %s71
    %p82 = scmp.eq.s32.totalorder %s24, 0
    %p83 = por %p81, %p82
    %p84 = scmp.ne.s32.totalorder %s70, %s71
    %p85 = scmp.eq.s32.totalorder %s25, 1
    %p86 = por %p84, %p85
    %p88 = scmp.ne.s32.totalorder %s71, %s87
    %p89 = scmp.eq.s32.totalorder %s25, 0
    %p90 = por %p88, %p89
    %s91 = ssub.s32 %s27, %s34
    %p92 = scmp.eq.s32.totalorder %s91, 0
    %s94 = sadd.s32 %s93, 1
    %s95 = scalar_select %p92, %s93, %s94
    %p98 = pneg %p92
    %p99 = scmp.eq.s32.totalorder %s19, 1
    %p100 = por %p98, %p99
    %p101 = scmp.ne.s32.totalorder %s93, %s96
    %p102 = scmp.eq.s32.totalorder %s19, 0
    %p103 = por %p101, %p102
    %p104 = scmp.ne.s32.totalorder %s93, %s96
    %p105 = scmp.eq.s32.totalorder %s24, 1
    %p106 = por %p104, %p105
    %p107 = scmp.ne.s32.totalorder %s96, %s97
    %p108 = scmp.eq.s32.totalorder %s24, 0
    %p109 = por %p107, %p108
    %p110 = scmp.ne.s32.totalorder %s96, %s97
    %p111 = scmp.eq.s32.totalorder %s25, 1
    %p112 = por %p110, %p111
    %p114 = scmp.ne.s32.totalorder %s97, %s113
    %p115 = scmp.eq.s32.totalorder %s25, 0
    %p116 = por %p114, %p115
    %s117 = ssub.s32 %s27, %s34
    %p118 = scmp.eq.s32.totalorder %s117, 0
    %s120 = sadd.s32 %s119, 1
    %s121 = scalar_select %p118, %s119, %s120
    %p124 = pneg %p118
    %p125 = scmp.eq.s32.totalorder %s19, 1
    %p126 = por %p124, %p125
    %p127 = scmp.ne.s32.totalorder %s119, %s122
    %p128 = scmp.eq.s32.totalorder %s19, 0
    %p129 = por %p127, %p128
    %p130 = scmp.ne.s32.totalorder %s119, %s122
    %p131 = scmp.eq.s32.totalorder %s24, 1
    %p132 = por %p130, %p131
    %p133 = scmp.ne.s32.totalorder %s122, %s123
    %p134 = scmp.eq.s32.totalorder %s24, 0
    %p135 = por %p133, %p134
    %p136 = scmp.ne.s32.totalorder %s122, %s123
    %p137 = scmp.eq.s32.totalorder %s25, 1
    %p138 = por %p136, %p137
    %p140 = scmp.ne.s32.totalorder %s123, %s139
    %p141 = scmp.eq.s32.totalorder %s25, 0
    %p142 = por %p140, %p141
    %s143 = ssub.s32 %s27, %s34
    %p144 = scmp.eq.s32.totalorder %s143, 0
    %s146 = sadd.s32 %s145, 1
    %s147 = scalar_select %p144, %s145, %s146
    %p150 = pneg %p144
    %p151 = scmp.eq.s32.totalorder %s19, 1
    %p152 = por %p150, %p151
    %p153 = scmp.ne.s32.totalorder %s145, %s148
    %p154 = scmp.eq.s32.totalorder %s19, 0
    %p155 = por %p153, %p154
    %p156 = scmp.ne.s32.totalorder %s145, %s148
    %p157 = scmp.eq.s32.totalorder %s24, 1
    %p158 = por %p156, %p157
    %p159 = scmp.ne.s32.totalorder %s148, %s149
    %p160 = scmp.eq.s32.totalorder %s24, 0
    %p161 = por %p159, %p160
    %p162 = scmp.ne.s32.totalorder %s148, %s149
    %p163 = scmp.eq.s32.totalorder %s25, 1
    %p164 = por %p162, %p163
    %p166 = scmp.ne.s32.totalorder %s149, %s165
    %p167 = scmp.eq.s32.totalorder %s25, 0
    %p168 = por %p166, %p167
    %s169 = ssub.s32 %s27, %s34
    %p170 = scmp.eq.s32.totalorder %s169, 0
    %s172 = sadd.s32 %s171, 1
    %s173 = scalar_select %p170, %s171, %s172
    %p176 = pneg %p170
    %p177 = scmp.eq.s32.totalorder %s19, 1
    %p178 = por %p176, %p177
    %p179 = scmp.ne.s32.totalorder %s171, %s174
    %p180 = scmp.eq.s32.totalorder %s19, 0
    %p181 = por %p179, %p180
    %p182 = scmp.ne.s32.totalorder %s171, %s174
    %p183 = scmp.eq.s32.totalorder %s24, 1
    %p184 = por %p182, %p183
    %p185 = scmp.ne.s32.totalorder %s174, %s175
    %p186 = scmp.eq.s32.totalorder %s24, 0
    %p187 = por %p185, %p186
    %p188 = scmp.ne.s32.totalorder %s174, %s175
    %p189 = scmp.eq.s32.totalorder %s25, 1
    %p190 = por %p188, %p189
    %p192 = scmp.ne.s32.totalorder %s175, %s191
    %p193 = scmp.eq.s32.totalorder %s25, 0
    %p194 = por %p192, %p193
    %s195 = ssub.s32 %s27, %s34
    %p196 = scmp.eq.s32.totalorder %s195, 0
    %s198 = sadd.s32 %s197, 1
    %s199 = scalar_select %p196, %s197, %s198
    %p202 = pneg %p196
    %p203 = scmp.eq.s32.totalorder %s19, 1
    %p204 = por %p202, %p203
    %p205 = scmp.ne.s32.totalorder %s197, %s200
    %p206 = scmp.eq.s32.totalorder %s19, 0
    %p207 = por %p205, %p206
    %p208 = scmp.ne.s32.totalorder %s197, %s200
    %p209 = scmp.eq.s32.totalorder %s24, 1
    %p210 = por %p208, %p209
    %p211 = scmp.ne.s32.totalorder %s200, %s201
    %p212 = scmp.eq.s32.totalorder %s24, 0
    %p213 = por %p211, %p212
    %p214 = scmp.ne.s32.totalorder %s200, %s201
    %p215 = scmp.eq.s32.totalorder %s25, 1
    %p216 = por %p214, %p215
    %p218 = scmp.ne.s32.totalorder %s201, %s217
    %p219 = scmp.eq.s32.totalorder %s25, 0
    %p220 = por %p218, %p219
    %s221 = ssub.s32 %s27, %s34
    %p222 = scmp.eq.s32.totalorder %s221, 0
    %s224 = sadd.s32 %s223, 1
    %s225 = scalar_select %p222, %s223, %s224
    %p228 = pneg %p222
    %p229 = scmp.eq.s32.totalorder %s19, 1
    %p230 = por %p228, %p229
    %p231 = scmp.ne.s32.totalorder %s223, %s226
    %p232 = scmp.eq.s32.totalorder %s19, 0
    %p233 = por %p231, %p232
    %p234 = scmp.ne.s32.totalorder %s223, %s226
    %p235 = scmp.eq.s32.totalorder %s24, 1
    %p236 = por %p234, %p235
    %p237 = scmp.ne.s32.totalorder %s226, %s227
    %p238 = scmp.eq.s32.totalorder %s24, 0
    %p239 = por %p237, %p238
    %p240 = scmp.ne.s32.totalorder %s226, %s227
    %p241 = scmp.eq.s32.totalorder %s25, 1
    %p242 = por %p240, %p241
    %p244 = scmp.ne.s32.totalorder %s227, %s243
    %p245 = scmp.eq.s32.totalorder %s25, 0
    %p246 = por %p244, %p245
    %s247 = ssub.s32 %s27, %s34
    %p248 = scmp.eq.s32.totalorder %s247, 0
    %s250 = sadd.s32 %s249, 1
    %s251 = scalar_select %p248, %s249, %s250
    %p254 = pneg %p248
    %p255 = scmp.eq.s32.totalorder %s19, 1
    %p256 = por %p254, %p255
    %p257 = scmp.ne.s32.totalorder %s249, %s252
    %p258 = scmp.eq.s32.totalorder %s19, 0
    %p259 = por %p257, %p258
    %p260 = scmp.ne.s32.totalorder %s249, %s252
    %p261 = scmp.eq.s32.totalorder %s24, 1
    %p262 = por %p260, %p261
    %p263 = scmp.ne.s32.totalorder %s252, %s253
    %p264 = scmp.eq.s32.totalorder %s24, 0
    %p265 = por %p263, %p264
    %p266 = scmp.ne.s32.totalorder %s252, %s253
    %p267 = scmp.eq.s32.totalorder %s25, 1
    %p268 = por %p266, %p267
    %p270 = scmp.ne.s32.totalorder %s253, %s269
    %p271 = scmp.eq.s32.totalorder %s25, 0
    %p272 = por %p270, %p271
    %s273 = ssub.s32 %s27, %s34
    %p274 = scmp.eq.s32.totalorder %s273, 0
    %s276 = sadd.s32 %s275, 1
    %s277 = scalar_select %p274, %s275, %s276
    %p280 = pneg %p274
    %p281 = scmp.eq.s32.totalorder %s19, 1
    %p282 = por %p280, %p281
    %p283 = scmp.ne.s32.totalorder %s275, %s278
    %p284 = scmp.eq.s32.totalorder %s19, 0
    %p285 = por %p283, %p284
    %p286 = scmp.ne.s32.totalorder %s275, %s278
    %p287 = scmp.eq.s32.totalorder %s24, 1
    %p288 = por %p286, %p287
    %p289 = scmp.ne.s32.totalorder %s278, %s279
    %p290 = scmp.eq.s32.totalorder %s24, 0
    %p291 = por %p289, %p290
    %p292 = scmp.ne.s32.totalorder %s278, %s279
    %p293 = scmp.eq.s32.totalorder %s25, 1
    %p294 = por %p292, %p293
    %p296 = scmp.ne.s32.totalorder %s279, %s295
    %p297 = scmp.eq.s32.totalorder %s25, 0
    %p298 = por %p296, %p297
    %s299 = ssub.s32 %s27, %s34
    %p300 = scmp.eq.s32.totalorder %s299, 0
    %s302 = sadd.s32 %s301, 1
    %s303 = scalar_select %p300, %s301, %s302
    %p306 = pneg %p300
    %p307 = scmp.eq.s32.totalorder %s19, 1
    %p308 = por %p306, %p307
    %p309 = scmp.ne.s32.totalorder %s301, %s304
    %p310 = scmp.eq.s32.totalorder %s19, 0
    %p311 = por %p309, %p310
    %p312 = scmp.ne.s32.totalorder %s301, %s304
    %p313 = scmp.eq.s32.totalorder %s24, 1
    %p314 = por %p312, %p313
    %p315 = scmp.ne.s32.totalorder %s304, %s305
    %p316 = scmp.eq.s32.totalorder %s24, 0
    %p317 = por %p315, %p316
    %p318 = scmp.ne.s32.totalorder %s304, %s305
    %p319 = scmp.eq.s32.totalorder %s25, 1
    %p320 = por %p318, %p319
    %p322 = scmp.ne.s32.totalorder %s305, %s321
    %p323 = scmp.eq.s32.totalorder %s25, 0
    %p324 = por %p322, %p323
    %s325 = ssub.s32 %s27, %s34
    %p326 = scmp.eq.s32.totalorder %s325, 0
    %s328 = sadd.s32 %s327, 1
    %s329 = scalar_select %p326, %s327, %s328
    %p332 = pneg %p326
    %p333 = scmp.eq.s32.totalorder %s19, 1
    %p334 = por %p332, %p333
    %p335 = scmp.ne.s32.totalorder %s327, %s330
    %p336 = scmp.eq.s32.totalorder %s19, 0
    %p337 = por %p335, %p336
    %p338 = scmp.ne.s32.totalorder %s327, %s330
    %p339 = scmp.eq.s32.totalorder %s24, 1
    %p340 = por %p338, %p339
    %p341 = scmp.ne.s32.totalorder %s330, %s331
    %p342 = scmp.eq.s32.totalorder %s24, 0
    %p343 = por %p341, %p342
    %p344 = scmp.ne.s32.totalorder %s330, %s331
    %p345 = scmp.eq.s32.totalorder %s25, 1
    %p346 = por %p344, %p345
    %p348 = scmp.ne.s32.totalorder %s331, %s347
    %p349 = scmp.eq.s32.totalorder %s25, 0
    %p350 = por %p348, %p349
    %s351 = ssub.s32 %s27, %s34
    %p352 = scmp.eq.s32.totalorder %s351, 0
    %s354 = sadd.s32 %s353, 1
    %s355 = scalar_select %p352, %s353, %s354
    %p358 = pneg %p352
    %p359 = scmp.eq.s32.totalorder %s19, 1
    %p360 = por %p358, %p359
    %p361 = scmp.ne.s32.totalorder %s353, %s356
    %p362 = scmp.eq.s32.totalorder %s19, 0
    %p363 = por %p361, %p362
    %p364 = scmp.ne.s32.totalorder %s353, %s356
    %p365 = scmp.eq.s32.totalorder %s24, 1
    %p366 = por %p364, %p365
    %p367 = scmp.ne.s32.totalorder %s356, %s357
    %p368 = scmp.eq.s32.totalorder %s24, 0
    %p369 = por %p367, %p368
    %p370 = scmp.ne.s32.totalorder %s356, %s357
    %p371 = scmp.eq.s32.totalorder %s25, 1
    %p372 = por %p370, %p371
    %p374 = scmp.ne.s32.totalorder %s357, %s373
    %p375 = scmp.eq.s32.totalorder %s25, 0
    %p376 = por %p374, %p375
    %s377 = ssub.s32 %s26, %s38
    %p378 = scmp.eq.s32.totalorder %s377, 0
    %s380 = sadd.s32 %s379, 1
    %s381 = scalar_select %p378, %s379, %s380
    %p384 = pneg %p378
    %p385 = scmp.eq.s32.totalorder %s19, 1
    %p386 = por %p384, %p385
    %p387 = scmp.ne.s32.totalorder %s379, %s382
    %p388 = scmp.eq.s32.totalorder %s19, 0
    %p389 = por %p387, %p388
    %p390 = scmp.ne.s32.totalorder %s379, %s382
    %p391 = scmp.eq.s32.totalorder %s24, 1
    %p392 = por %p390, %p391
    %p393 = scmp.ne.s32.totalorder %s382, %s383
    %p394 = scmp.eq.s32.totalorder %s24, 0
    %p395 = por %p393, %p394
    %p396 = scmp.ne.s32.totalorder %s382, %s383
    %p397 = scmp.eq.s32.totalorder %s25, 1
    %p398 = por %p396, %p397
    %p400 = scmp.ne.s32.totalorder %s383, %s399
    %p401 = scmp.eq.s32.totalorder %s25, 0
    %p402 = por %p400, %p401
    %p403 = scmp.le.s32.totalorder 1, %s19
    %p404 = scmp.lt.s32.totalorder %s19, 3
    %p405 = pnand %p403, %p404
    %p406 = pneg %p405
    // Predicated region
    $region9: #{transformer_lm_forward.2} parent=5 // pred_check
      _
    $region10: #{transformer_lm_forward.2} parent=5 // pred_check_branch
      %408 = sbr.rel (%p405) target = $region12
    $region11: #{transformer_lm_forward.2} parent=5 // pred_region
      %s409 = ssub.s32 %s19, 1
      // Predicated region
      $region13: #{transformer_lm_forward.2} parent=11 // pred_check
        %p410 = pneg %p57
      $region14: #{transformer_lm_forward.2} parent=11 // pred_check_branch
        %412 = sbr.rel (%p410) target = $region16
      $region15: #{transformer_lm_forward.2} parent=11 // pred_region
        %s413 = smul.u32 2, %s28
        %p414 = scmp.lt.s32.totalorder %s413, 1
        %s415 = scalar_select %p414, %s413, 1
        %s416 = smul.addr %s415, 8
        %s417 = scalar_lea.vmem %s0, %s416
        %s418 = smul.u32 2, %s28
      $region16: #{transformer_lm_forward.2} parent=11 // pred_fallthru
        _
    $region12: #{transformer_lm_forward.2} parent=5 // pred_fallthru
      _
    %p419 = scmp.lt.s32.totalorder %s19, 2
    // Predicated region
    $region17: #{transformer_lm_forward.2} parent=5 // pred_check
      %p420 = pneg %p419
    $region18: #{transformer_lm_forward.2} parent=5 // pred_check_branch
      %422 = sbr.rel (%p420) target = $region20
    $region19: #{transformer_lm_forward.2} parent=5 // pred_region
      // Predicated region
      $region21: #{transformer_lm_forward.2} parent=19 // pred_check
        %p423 = pneg %p77
      $region22: #{transformer_lm_forward.2} parent=19 // pred_check_branch
        %425 = sbr.rel (%p423) target = $region24
      $region23: #{transformer_lm_forward.2} parent=19 // pred_region
        %p426 = scmp.lt.s32.totalorder %s27, 1
        %s427 = scalar_select %p426, %s27, 1
        %s428 = scalar_lea.vmem %s1, %s427
      $region24: #{transformer_lm_forward.2} parent=19 // pred_fallthru
        _
      // Predicated region
      $region25: #{transformer_lm_forward.2} parent=19 // pred_check
        %p429 = pneg %p103
      $region26: #{transformer_lm_forward.2} parent=19 // pred_check_branch
        %431 = sbr.rel (%p429) target = $region28
      $region27: #{transformer_lm_forward.2} parent=19 // pred_region
        %p432 = scmp.lt.s32.totalorder %s27, 1
        %s433 = scalar_select %p432, %s27, 1
        %s434 = scalar_lea.vmem %s2, %s433
      $region28: #{transformer_lm_forward.2} parent=19 // pred_fallthru
        _
      // Predicated region
      $region29: #{transformer_lm_forward.2} parent=19 // pred_check
        %p435 = pneg %p129
      $region30: #{transformer_lm_forward.2} parent=19 // pred_check_branch
        %437 = sbr.rel (%p435) target = $region32
      $region31: #{transformer_lm_forward.2} parent=19 // pred_region
        %p438 = scmp.lt.s32.totalorder %s27, 1
        %s439 = scalar_select %p438, %s27, 1
        %s440 = smul.addr %s439, 4
        %s441 = smul.addr %s440, 8
        %s442 = scalar_lea.vmem %s3, %s441
      $region32: #{transformer_lm_forward.2} parent=19 // pred_fallthru
        _
      // Predicated region
      $region33: #{transformer_lm_forward.2} parent=19 // pred_check
        %p443 = pneg %p155
      $region34: #{transformer_lm_forward.2} parent=19 // pred_check_branch
        %445 = sbr.rel (%p443) target = $region36
      $region35: #{transformer_lm_forward.2} parent=19 // pred_region
        %p446 = scmp.lt.s32.totalorder %s27, 1
        %s447 = scalar_select %p446, %s27, 1
        %s448 = scalar_lea.vmem %s4, %s447
      $region36: #{transformer_lm_forward.2} parent=19 // pred_fallthru
        _
      // Predicated region
      $region37: #{transformer_lm_forward.2} parent=19 // pred_check
        %p449 = pneg %p181
      $region38: #{transformer_lm_forward.2} parent=19 // pred_check_branch
        %451 = sbr.rel (%p449) target = $region40
      $region39: #{transformer_lm_forward.2} parent=19 // pred_region
        %p452 = scmp.lt.s32.totalorder %s27, 1
        %s453 = scalar_select %p452, %s27, 1
        %s454 = smul.addr %s453, 4
        %s455 = smul.addr %s454, 8
        %s456 = scalar_lea.vmem %s5, %s455
      $region40: #{transformer_lm_forward.2} parent=19 // pred_fallthru
        _
      // Predicated region
      $region41: #{transformer_lm_forward.2} parent=19 // pred_check
        %p457 = pneg %p207
      $region42: #{transformer_lm_forward.2} parent=19 // pred_check_branch
        %459 = sbr.rel (%p457) target = $region44
      $region43: #{transformer_lm_forward.2} parent=19 // pred_region
        %p460 = scmp.lt.s32.totalorder %s27, 1
        %s461 = scalar_select %p460, %s27, 1
        %s462 = scalar_lea.vmem %s6, %s461
      $region44: #{transformer_lm_forward.2} parent=19 // pred_fallthru
        _
      // Predicated region
      $region45: #{transformer_lm_forward.2} parent=19 // pred_check
        %p463 = pneg %p233
      $region46: #{transformer_lm_forward.2} parent=19 // pred_check_branch
        %465 = sbr.rel (%p463) target = $region48
      $region47: #{transformer_lm_forward.2} parent=19 // pred_region
        %p466 = scmp.lt.s32.totalorder %s27, 1
        %s467 = scalar_select %p466, %s27, 1
        %s468 = scalar_lea.vmem %s7, %s467
      $region48: #{transformer_lm_forward.2} parent=19 // pred_fallthru
        _
      // Predicated region
      $region49: #{transformer_lm_forward.2} parent=19 // pred_check
        %p469 = pneg %p259
      $region50: #{transformer_lm_forward.2} parent=19 // pred_check_branch
        %471 = sbr.rel (%p469) target = $region52
      $region51: #{transformer_lm_forward.2} parent=19 // pred_region
        %p472 = scmp.lt.s32.totalorder %s27, 1
        %s473 = scalar_select %p472, %s27, 1
        %s474 = scalar_lea.vmem %s8, %s473
      $region52: #{transformer_lm_forward.2} parent=19 // pred_fallthru
        _
      // Predicated region
      $region53: #{transformer_lm_forward.2} parent=19 // pred_check
        %p475 = pneg %p285
      $region54: #{transformer_lm_forward.2} parent=19 // pred_check_branch
        %477 = sbr.rel (%p475) target = $region56
      $region55: #{transformer_lm_forward.2} parent=19 // pred_region
        %p478 = scmp.lt.s32.totalorder %s27, 1
        %s479 = scalar_select %p478, %s27, 1
        %s480 = smul.addr %s479, 4
        %s481 = smul.addr %s480, 8
        %s482 = scalar_lea.vmem %s9, %s481
      $region56: #{transformer_lm_forward.2} parent=19 // pred_fallthru
        _
      // Predicated region
      $region57: #{transformer_lm_forward.2} parent=19 // pred_check
        %p483 = pneg %p311
      $region58: #{transformer_lm_forward.2} parent=19 // pred_check_branch
        %485 = sbr.rel (%p483) target = $region60
      $region59: #{transformer_lm_forward.2} parent=19 // pred_region
        %p486 = scmp.lt.s32.totalorder %s27, 1
        %s487 = scalar_select %p486, %s27, 1
        %s488 = scalar_lea.vmem %s10, %s487
      $region60: #{transformer_lm_forward.2} parent=19 // pred_fallthru
        _
      // Predicated region
      $region61: #{transformer_lm_forward.2} parent=19 // pred_check
        %p489 = pneg %p337
      $region62: #{transformer_lm_forward.2} parent=19 // pred_check_branch
        %491 = sbr.rel (%p489) target = $region64
      $region63: #{transformer_lm_forward.2} parent=19 // pred_region
        %p492 = scmp.lt.s32.totalorder %s27, 1
        %s493 = scalar_select %p492, %s27, 1
        %s494 = smul.addr %s493, 8
        %s495 = smul.addr %s494, 8
        %s496 = scalar_lea.vmem %s11, %s495
      $region64: #{transformer_lm_forward.2} parent=19 // pred_fallthru
        _
      // Predicated region
      $region65: #{transformer_lm_forward.2} parent=19 // pred_check
        %p497 = pneg %p363
      $region66: #{transformer_lm_forward.2} parent=19 // pred_check_branch
        %499 = sbr.rel (%p497) target = $region68
      $region67: #{transformer_lm_forward.2} parent=19 // pred_region
        %p500 = scmp.lt.s32.totalorder %s27, 1
        %s501 = scalar_select %p500, %s27, 1
        %s502 = scalar_lea.vmem %s12, %s501
      $region68: #{transformer_lm_forward.2} parent=19 // pred_fallthru
        _
    $region20: #{transformer_lm_forward.2} parent=5 // pred_fallthru
      _
    %p503 = scmp.le.s32.totalorder 1, %s19
    %p504 = scmp.lt.s32.totalorder %s19, 3
    %p505 = pnand %p503, %p504
    %p506 = pneg %p505
    // Predicated region
    $region69: #{transformer_lm_forward.2} parent=5 // pred_check
      _
    $region70: #{transformer_lm_forward.2} parent=5 // pred_check_branch
      %508 = sbr.rel (%p505) target = $region72
    $region71: #{transformer_lm_forward.2} parent=5 // pred_region
      %s509 = ssub.s32 %s19, 1
      %s510 = smul.u32 2, %s28
      %p511 = scmp.lt.s32.totalorder %s510, 1
      %s512 = scalar_select %p511, %s510, 1
      %s513 = smul.addr %s512, 8
      %s514 = scalar_lea.vmem %s0, %s513
      %p515 = pneg %p57
      %p516 = pneg %p54
      %p517 = scmp.lt.s32.totalorder %s29, 1
      %s518 = scalar_select %p517, %s29, 1
      %s519 = scalar_lea.vmem %s1, %s518
      %p520 = pneg %p83
      %p521 = pneg %p80
      %p522 = scmp.lt.s32.totalorder %s29, 1
      %s523 = scalar_select %p522, %s29, 1
      %s524 = scalar_lea.vmem %s2, %s523
      %p525 = pneg %p109
      %p526 = pneg %p106
      %p527 = scmp.lt.s32.totalorder %s29, 1
      %s528 = scalar_select %p527, %s29, 1
      %s529 = smul.addr %s528, 4
      %s530 = smul.addr %s529, 8
      %s531 = scalar_lea.vmem %s3, %s530
      %p532 = pneg %p135
      %p533 = pneg %p132
      %p534 = scmp.lt.s32.totalorder %s29, 1
      %s535 = scalar_select %p534, %s29, 1
      %s536 = scalar_lea.vmem %s4, %s535
      %p537 = pneg %p161
      %p538 = pneg %p158
      %p539 = scmp.lt.s32.totalorder %s29, 1
      %s540 = scalar_select %p539, %s29, 1
      %s541 = smul.addr %s540, 4
      %s542 = smul.addr %s541, 8
      %s543 = scalar_lea.vmem %s5, %s542
      %p544 = pneg %p187
      %p545 = pneg %p184
      %p546 = scmp.lt.s32.totalorder %s29, 1
      %s547 = scalar_select %p546, %s29, 1
      %s548 = scalar_lea.vmem %s6, %s547
      %p549 = pneg %p213
      %p550 = pneg %p210
      %p551 = scmp.lt.s32.totalorder %s29, 1
      %s552 = scalar_select %p551, %s29, 1
      %s553 = scalar_lea.vmem %s7, %s552
      %p554 = pneg %p239
      %p555 = pneg %p236
      %p556 = scmp.lt.s32.totalorder %s29, 1
      %s557 = scalar_select %p556, %s29, 1
      %s558 = scalar_lea.vmem %s8, %s557
      %p559 = pneg %p265
      %p560 = pneg %p262
      %p561 = scmp.lt.s32.totalorder %s29, 1
      %s562 = scalar_select %p561, %s29, 1
      %s563 = smul.addr %s562, 4
      %s564 = smul.addr %s563, 8
      %s565 = scalar_lea.vmem %s9, %s564
      %p566 = pneg %p291
      %p567 = pneg %p288
      %p568 = scmp.lt.s32.totalorder %s29, 1
      %s569 = scalar_select %p568, %s29, 1
      %s570 = scalar_lea.vmem %s10, %s569
      %p571 = pneg %p317
      %p572 = pneg %p314
      %p573 = scmp.lt.s32.totalorder %s29, 1
      %s574 = scalar_select %p573, %s29, 1
      %s575 = smul.addr %s574, 8
      %s576 = smul.addr %s575, 8
      %s577 = scalar_lea.vmem %s11, %s576
      %p578 = pneg %p343
      %p579 = pneg %p340
      %p580 = scmp.lt.s32.totalorder %s29, 1
      %s581 = scalar_select %p580, %s29, 1
      %s582 = scalar_lea.vmem %s12, %s581
      %p583 = pneg %p369
      %p584 = pneg %p366
      %p585 = pneg %p395
      %p586 = pneg %p392
      %s587 = smul.u32 2, %s28
      %p588 = scmp.lt.s32.totalorder %s587, 1
      %s589 = scalar_select %p588, %s587, 1
      %s590 = smul.addr %s589, 8
      %s591 = scalar_lea.vmem %s13, %s590
      %s592 = smul.u32 2, %s28
      %p593 = scmp.lt.s32.totalorder %s592, 1
      %s594 = scalar_select %p593, %s592, 1
      %s595 = smul.addr %s594, 8
      %s596 = scalar_lea.vmem %s0, %s595
      %s597 = smul.u32 2, %s28
      %p598 = scmp.lt.s32.totalorder %s29, 1
      %s599 = scalar_select %p598, %s29, 1
      %s600 = scalar_lea.vmem %s1, %s599
      %p601 = scmp.lt.s32.totalorder %s29, 1
      %s602 = scalar_select %p601, %s29, 1
      %s603 = scalar_lea.vmem %s2, %s602
      %p604 = scmp.lt.s32.totalorder %s29, 1
      %s605 = scalar_select %p604, %s29, 1
      %s606 = smul.addr %s605, 4
      %s607 = smul.addr %s606, 8
      %s608 = scalar_lea.vmem %s3, %s607
      %p609 = scmp.lt.s32.totalorder %s29, 1
      %s610 = scalar_select %p609, %s29, 1
      %s611 = scalar_lea.vmem %s4, %s610
      %p612 = scmp.lt.s32.totalorder %s29, 1
      %s613 = scalar_select %p612, %s29, 1
      %s614 = smul.addr %s613, 4
      %s615 = smul.addr %s614, 8
      %s616 = scalar_lea.vmem %s5, %s615
      %p617 = scmp.lt.s32.totalorder %s29, 1
      %s618 = scalar_select %p617, %s29, 1
      %s619 = scalar_lea.vmem %s6, %s618
      %p620 = scmp.lt.s32.totalorder %s29, 1
      %s621 = scalar_select %p620, %s29, 1
      %s622 = scalar_lea.vmem %s7, %s621
      %p623 = scmp.lt.s32.totalorder %s29, 1
      %s624 = scalar_select %p623, %s29, 1
      %s625 = scalar_lea.vmem %s8, %s624
      %p626 = scmp.lt.s32.totalorder %s29, 1
      %s627 = scalar_select %p626, %s29, 1
      %s628 = smul.addr %s627, 4
      %s629 = smul.addr %s628, 8
      %s630 = scalar_lea.vmem %s9, %s629
      %p631 = scmp.lt.s32.totalorder %s29, 1
      %s632 = scalar_select %p631, %s29, 1
      %s633 = scalar_lea.vmem %s10, %s632
      %p634 = scmp.lt.s32.totalorder %s29, 1
      %s635 = scalar_select %p634, %s29, 1
      %s636 = smul.addr %s635, 8
      %s637 = smul.addr %s636, 8
      %s638 = scalar_lea.vmem %s11, %s637
      %p639 = scmp.lt.s32.totalorder %s29, 1
      %s640 = scalar_select %p639, %s29, 1
      %s641 = scalar_lea.vmem %s12, %s640
      %s642 = smul.u32 2, %s28
      %p643 = scmp.lt.s32.totalorder %s642, 1
      %s644 = scalar_select %p643, %s642, 1
      %s645 = smul.addr %s644, 8
      %s646 = scalar_lea.vmem %s13, %s645
      %s647 = smul.u32 2, %s28
      %p648 = scmp.eq.s32.totalorder %s29, 0
      // Predicated region
      $region73: #{transformer_lm_forward.2} parent=71 // pred_check
        %p649 = pneg %p648
      $region74: #{transformer_lm_forward.2} parent=71 // pred_check_branch
        %651 = sbr.rel (%p649) target = $region76
      $region75: #{transformer_lm_forward.2} parent=71 // pred_region
        %v652 = vld [vmem:[%s596] sm:$0xff]
        %v653 = vld [vmem:[%s596 + $0x8] sm:$0xff]
        %vm654 = vcmask 261120
        %655 = vst.msk [vmem:[%s646] sm:$0xff] %vm654, %v652
        %656 = vst.msk [vmem:[%s646 + $0x8] sm:$0xff] %vm654, %v653
      $region76: #{transformer_lm_forward.2} parent=71 // pred_fallthru
        _
      %v657 = vld [vmem:[%s646] sm:$0xff]
      %v658 = vld [vmem:[%s646 + $0x8] sm:$0xff]
      %v659 = vld [vmem:[%s600] sm:$0x1]
      %v660 = vld [vmem:[%s603] sm:$0x1]
      %vm661 = vcmask 261120
      %v662 = vsel %vm661, %v657, 0.0
      %663 = vadd.xlane.f32.xlu0 %v662
      %v664 = vpop.xlane.xlu0 %663
      %v665 = vsel %vm661, %v658, 0.0
      %666 = vadd.xlane.f32.xlu0 %v665
      %v667 = vpop.xlane.xlu0 %666
      %v668 = vrcp.pop 32.0
      %v669 = vmul.f32 %v664, %v668
      %v670 = vmul.f32 %v667, %v668
      %v671 = vsub.f32 %v657, %v669
      %v672 = vsub.f32 %v658, %v670
      %v673 = vmul.f32 %v671, %v671
      %v674 = vmul.f32 %v672, %v672
      %v675 = vsel %vm661, %v673, 0.0
      %676 = vadd.xlane.f32.xlu0 %v675
      %v677 = vpop.xlane.xlu0 %676
      %v678 = vsel %vm661, %v674, 0.0
      %679 = vadd.xlane.f32.xlu0 %v678
      %v680 = vpop.xlane.xlu0 %679
      %v681 = vmul.f32 %v677, %v668
      %v682 = vmul.f32 %v680, %v668
      %v683 = vadd.f32 %v681, 1e-05
      %v684 = vadd.f32 %v682, 1e-05
      %v685 = vrsqrt.pop %v683
      %v686 = vrsqrt.pop %v684
      %v687 = vmul.f32 %v671, %v685
      %v688 = vmul.f32 %v672, %v686
      %v690 = vlaneseq
      %v691 = vshrl.u32 %v690, 7
      %v692 = vsub.s32 0, %v691
      %v693 = vrot.slane %v659, %v692
      %v695 = vmul.f32 %v687, %v693
      %v696 = vmul.f32 %v688, %v693
      %v698 = vlaneseq
      %v699 = vshrl.u32 %v698, 7
      %v700 = vsub.s32 0, %v699
      %v701 = vrot.slane %v660, %v700
      %v703 = vadd.f32 %v695, %v701
      %v704 = vadd.f32 %v696, %v701
      %v705 = vld [vmem:[%s608] sm:$0xff]
      %v706 = vld [vmem:[%s608 + $0x8] sm:$0xff]
      %v707 = vld [vmem:[%s608 + $0x10] sm:$0xff]
      %v708 = vld [vmem:[%s608 + $0x18] sm:$0xff]
      %v709 = vld [vmem:[%s611] sm:$0x1]
      %v711 = vlaneseq
      %v712 = vshrl.u32 %v711, 7
      %v713 = vsub.s32 0, %v712
      %v714 = vrot.slane %v709, %v713
      %v717 = vsel %vm661, %v703, 0
      %v720 = vsel %vm661, %v704, 0
      %722 = vmatprep.subr.mxu0 0.0
      %723 = vmatpush1.msra.mxu0 %v705
      %724 = vmatprep.subr.mxu0 0.0
      %725 = vmatpush1.msra.mxu0 %v706
      %726 = vmatprep.subr.mxu0 0.0
      %727 = vmatpush1.msra.mxu0 %v707
      %728 = vmatprep.subr.mxu0 0.0
      %729 = vmatpush1.msra.mxu0 %v708
      %730 = vmatprep.subr.mxu0 0.0
      %731 = vmatpush1.msra.mxu0 0.0
      %732 = vmatprep.subr.mxu0 0.0
      %733 = vmatpush1.msra.mxu0 0.0
      %734 = vmatprep.subr.mxu0 0.0
      %735 = vmatpush1.msra.mxu0 0.0
      %736 = vmatprep.subr.mxu0 0.0
      %737 = vmatpush1.msra.mxu0 0.0
      %738 = vmatprep.subr.mxu0 0.0
      %739 = vmatpush1.msra.mxu0 0.0
      %740 = vmatprep.subr.mxu0 0.0
      %741 = vmatpush1.msra.mxu0 0.0
      %742 = vmatprep.subr.mxu0 0.0
      %743 = vmatpush1.msra.mxu0 0.0
      %744 = vmatprep.subr.mxu0 0.0
      %745 = vmatpush1.msra.mxu0 0.0
      %746 = vmatprep.subr.mxu0 0.0
      %747 = vmatpush1.msra.mxu0 0.0
      %748 = vmatprep.subr.mxu0 0.0
      %749 = vmatpush1.msra.mxu0 0.0
      %750 = vmatprep.subr.mxu0 0.0
      %751 = vmatpush1.msra.mxu0 0.0
      %752 = vmatprep.subr.mxu0 0.0
      %753 = vmatpush1.msra.mxu0 0.0
      %754 = vmatprep.subr.mxu0 0.0
      %755 = vmatpush1.msra.mxu0 0.0
      %756 = vmatprep.subr.mxu0 0.0
      %757 = vmatpush1.msra.mxu0 0.0
      %758 = vmatprep.subr.mxu0 0.0
      %759 = vmatpush1.msra.mxu0 0.0
      %760 = vmatprep.subr.mxu0 0.0
      %761 = vmatpush1.msra.mxu0 0.0
      %762 = vmatprep.subr.mxu0 0.0
      %763 = vmatpush1.msra.mxu0 0.0
      %764 = vmatprep.subr.mxu0 0.0
      %765 = vmatpush1.msra.mxu0 0.0
      %766 = vmatprep.subr.mxu0 0.0
      %767 = vmatpush1.msra.mxu0 0.0
      %768 = vmatprep.subr.mxu0 0.0
      %769 = vmatpush1.msra.mxu0 0.0
      %770 = vmatprep.subr.mxu0 0.0
      %771 = vmatpush1.msra.mxu0 0.0
      %772 = vmatprep.subr.mxu0 0.0
      %773 = vmatpush1.msra.mxu0 0.0
      %774 = vmatprep.subr.mxu0 0.0
      %775 = vmatpush1.msra.mxu0 0.0
      %776 = vmatprep.subr.mxu0 0.0
      %777 = vmatpush1.msra.mxu0 0.0
      %778 = vmatprep.subr.mxu0 0.0
      %779 = vmatpush1.msra.mxu0 0.0
      %780 = vmatprep.subr.mxu0 0.0
      %781 = vmatpush1.msra.mxu0 0.0
      %782 = vmatprep.subr.mxu0 0.0
      %783 = vmatpush1.msra.mxu0 0.0
      %784 = vmatprep.subr.mxu0 0.0
      %785 = vmatpush1.msra.mxu0 0.0
      %786 = vmatprep.mubr.f32.mxu0 0.0
      %787 = vmatmul.mubr.f32.gmra.mrb[0].mxu0 %v717
      %v788 = vpop.f32.mrb[0].mxu0
      %v789 = vadd.f32 %v714, %v788
      %v790 = vpop.f32.mrb[0].mxu0
      %791 = vmatprep.mubr.f32.mxu0 0.0
      %792 = vmatmul.mubr.f32.gmra.mrb[0].mxu0 %v720
      %v793 = vpop.f32.mrb[0].mxu0
      %v794 = vadd.f32 %v714, %v793
      %v795 = vpop.f32.mrb[0].mxu0
      %796 = vdwg.mxu0
      %v797 = vmul.f32 %v789, 0.25
      %v798 = vmul.f32 %v794, 0.25
      %v799 = vlaneseq
      %v800 = vshrl.u32 %v799, 7
      %v801 = vlaneseq
      %v802 = vand.u32 %v801, 127
      %vm803 = vcmp.gt.s32.totalorder %v802, %v800
      %v804 = vsel %vm803, -inf, 0.0
      %806 = vrot.lane.b32.xlu0 %v789, 96
      %v807 = vpop.permute.xlu0 %806
      %vm808 = vcmask 130048
      %v810 = vsel %vm808, %v797, 0
      %v812 = vsel %vm808, %v807, 0
      %814 = vmatprep.subr.mxu0 0.0
      %815 = vmatpush1.xpose.msra.mxu0 %v812
      %816 = vmatprep.subr.mxu0 0.0
      %817 = vmatpush1.xpose.msra.mxu0 0.0
      %818 = vmatprep.subr.mxu0 0.0
      %819 = vmatpush1.xpose.msra.mxu0 0.0
      %820 = vmatprep.subr.mxu0 0.0
      %821 = vmatpush1.xpose.msra.mxu0 0.0
      %822 = vmatprep.subr.mxu0 0.0
      %823 = vmatpush1.xpose.msra.mxu0 0.0
      %824 = vmatprep.subr.mxu0 0.0
      %825 = vmatpush1.xpose.msra.mxu0 0.0
      %826 = vmatprep.subr.mxu0 0.0
      %827 = vmatpush1.xpose.msra.mxu0 0.0
      %828 = vmatprep.subr.mxu0 0.0
      %829 = vmatpush1.xpose.msra.mxu0 0.0
      %830 = vmatprep.subr.mxu0 0.0
      %831 = vmatpush1.xpose.msra.mxu0 0.0
      %832 = vmatprep.subr.mxu0 0.0
      %833 = vmatpush1.xpose.msra.mxu0 0.0
      %834 = vmatprep.subr.mxu0 0.0
      %835 = vmatpush1.xpose.msra.mxu0 0.0
      %836 = vmatprep.subr.mxu0 0.0
      %837 = vmatpush1.xpose.msra.mxu0 0.0
      %838 = vmatprep.subr.mxu0 0.0
      %839 = vmatpush1.xpose.msra.mxu0 0.0
      %840 = vmatprep.subr.mxu0 0.0
      %841 = vmatpush1.xpose.msra.mxu0 0.0
      %842 = vmatprep.subr.mxu0 0.0
      %843 = vmatpush1.xpose.msra.mxu0 0.0
      %844 = vmatprep.subr.mxu0 0.0
      %845 = vmatpush1.xpose.msra.mxu0 0.0
      %846 = vmatprep.subr.mxu0 0.0
      %847 = vmatpush1.xpose.msra.mxu0 0.0
      %848 = vmatprep.subr.mxu0 0.0
      %849 = vmatpush1.xpose.msra.mxu0 0.0
      %850 = vmatprep.subr.mxu0 0.0
      %851 = vmatpush1.xpose.msra.mxu0 0.0
      %852 = vmatprep.subr.mxu0 0.0
      %853 = vmatpush1.xpose.msra.mxu0 0.0
      %854 = vmatprep.subr.mxu0 0.0
      %855 = vmatpush1.xpose.msra.mxu0 0.0
      %856 = vmatprep.subr.mxu0 0.0
      %857 = vmatpush1.xpose.msra.mxu0 0.0
      %858 = vmatprep.subr.mxu0 0.0
      %859 = vmatpush1.xpose.msra.mxu0 0.0
      %860 = vmatprep.subr.mxu0 0.0
      %861 = vmatpush1.xpose.msra.mxu0 0.0
      %862 = vmatprep.subr.mxu0 0.0
      %863 = vmatpush1.xpose.msra.mxu0 0.0
      %864 = vmatprep.subr.mxu0 0.0
      %865 = vmatpush1.xpose.msra.mxu0 0.0
      %866 = vmatprep.subr.mxu0 0.0
      %867 = vmatpush1.xpose.msra.mxu0 0.0
      %868 = vmatprep.subr.mxu0 0.0
      %869 = vmatpush1.xpose.msra.mxu0 0.0
      %870 = vmatprep.subr.mxu0 0.0
      %871 = vmatpush1.xpose.msra.mxu0 0.0
      %872 = vmatprep.subr.mxu0 0.0
      %873 = vmatpush1.xpose.msra.mxu0 0.0
      %874 = vmatprep.subr.mxu0 0.0
      %875 = vmatpush1.xpose.msra.mxu0 0.0
      %876 = vmatprep.subr.mxu0 0.0
      %877 = vmatpush1.xpose.msra.mxu0 0.0
      %878 = vmatprep.mubr.f32.mxu0 0.0
      %879 = vmatmul.mubr.f32.gmra.mrb[0].mxu0 %v810
      %v880 = vpop.f32.mrb[0].mxu0
      %v881 = vadd.f32 %v804, %v880
      %v882 = vpop.f32.mrb[0].mxu0
      %883 = vdwg.mxu0
      %885 = vrot.lane.b32.xlu0 %v794, 96
      %v886 = vpop.permute.xlu0 %885
      %v888 = vsel %vm808, %v798, 0
      %v890 = vsel %vm808, %v886, 0
      %892 = vmatprep.subr.mxu0 0.0
      %893 = vmatpush1.xpose.msra.mxu0 %v890
      %894 = vmatprep.subr.mxu0 0.0
      %895 = vmatpush1.xpose.msra.mxu0 0.0
      %896 = vmatprep.subr.mxu0 0.0
      %897 = vmatpush1.xpose.msra.mxu0 0.0
      %898 = vmatprep.subr.mxu0 0.0
      %899 = vmatpush1.xpose.msra.mxu0 0.0
      %900 = vmatprep.subr.mxu0 0.0
      %901 = vmatpush1.xpose.msra.mxu0 0.0
      %902 = vmatprep.subr.mxu0 0.0
      %903 = vmatpush1.xpose.msra.mxu0 0.0
      %904 = vmatprep.subr.mxu0 0.0
      %905 = vmatpush1.xpose.msra.mxu0 0.0
      %906 = vmatprep.subr.mxu0 0.0
      %907 = vmatpush1.xpose.msra.mxu0 0.0
      %908 = vmatprep.subr.mxu0 0.0
      %909 = vmatpush1.xpose.msra.mxu0 0.0
      %910 = vmatprep.subr.mxu0 0.0
      %911 = vmatpush1.xpose.msra.mxu0 0.0
      %912 = vmatprep.subr.mxu0 0.0
      %913 = vmatpush1.xpose.msra.mxu0 0.0
      %914 = vmatprep.subr.mxu0 0.0
      %915 = vmatpush1.xpose.msra.mxu0 0.0
      %916 = vmatprep.subr.mxu0 0.0
      %917 = vmatpush1.xpose.msra.mxu0 0.0
      %918 = vmatprep.subr.mxu0 0.0
      %919 = vmatpush1.xpose.msra.mxu0 0.0
      %920 = vmatprep.subr.mxu0 0.0
      %921 = vmatpush1.xpose.msra.mxu0 0.0
      %922 = vmatprep.subr.mxu0 0.0
      %923 = vmatpush1.xpose.msra.mxu0 0.0
      %924 = vmatprep.subr.mxu0 0.0
      %925 = vmatpush1.xpose.msra.mxu0 0.0
      %926 = vmatprep.subr.mxu0 0.0
      %927 = vmatpush1.xpose.msra.mxu0 0.0
      %928 = vmatprep.subr.mxu0 0.0
      %929 = vmatpush1.xpose.msra.mxu0 0.0
      %930 = vmatprep.subr.mxu0 0.0
      %931 = vmatpush1.xpose.msra.mxu0 0.0
      %932 = vmatprep.subr.mxu0 0.0
      %933 = vmatpush1.xpose.msra.mxu0 0.0
      %934 = vmatprep.subr.mxu0 0.0
      %935 = vmatpush1.xpose.msra.mxu0 0.0
      %936 = vmatprep.subr.mxu0 0.0
      %937 = vmatpush1.xpose.msra.mxu0 0.0
      %938 = vmatprep.subr.mxu0 0.0
      %939 = vmatpush1.xpose.msra.mxu0 0.0
      %940 = vmatprep.subr.mxu0 0.0
      %941 = vmatpush1.xpose.msra.mxu0 0.0
      %942 = vmatprep.subr.mxu0 0.0
      %943 = vmatpush1.xpose.msra.mxu0 0.0
      %944 = vmatprep.subr.mxu0 0.0
      %945 = vmatpush1.xpose.msra.mxu0 0.0
      %946 = vmatprep.subr.mxu0 0.0
      %947 = vmatpush1.xpose.msra.mxu0 0.0
      %948 = vmatprep.subr.mxu0 0.0
      %949 = vmatpush1.xpose.msra.mxu0 0.0
      %950 = vmatprep.subr.mxu0 0.0
      %951 = vmatpush1.xpose.msra.mxu0 0.0
      %952 = vmatprep.subr.mxu0 0.0
      %953 = vmatpush1.xpose.msra.mxu0 0.0
      %954 = vmatprep.subr.mxu0 0.0
      %955 = vmatpush1.xpose.msra.mxu0 0.0
      %956 = vmatprep.mubr.f32.mxu0 0.0
      %957 = vmatmul.mubr.f32.gmra.mrb[0].mxu0 %v888
      %v958 = vpop.f32.mrb[0].mxu0
      %v959 = vadd.f32 %v804, %v958
      %v960 = vpop.f32.mrb[0].mxu0
      %961 = vdwg.mxu0
      %vm962 = vcmask 64512
      %v963 = vsel %vm962, %v881, -inf
      %964 = vmax.xlane.f32.xlu0 %v963
      %v965 = vpop.xlane.xlu0 %964
      %v966 = vsel %vm962, %v959, -inf
      %967 = vmax.xlane.f32.xlu0 %v966
      %v968 = vpop.xlane.xlu0 %967
      %v969 = vsub.f32 %v881, %v965
      %v970 = vsub.f32 %v959, %v968
      %v971 = vmul.f32 %v969, 1.442695
      %v972 = vpow.pop %v971
      %v973 = vmul.f32 %v970, 1.442695
      %v974 = vpow.pop %v973
      %v975 = vsel %vm962, %v972, 0.0
      %976 = vadd.xlane.f32.xlu0 %v975
      %v977 = vpop.xlane.xlu0 %976
      %v978 = vsel %vm962, %v974, 0.0
      %979 = vadd.xlane.f32.xlu0 %v978
      %v980 = vpop.xlane.xlu0 %979
      %v981 = vrcp.pop %v977
      %v982 = vmul.f32 %v972, %v981
      %v983 = vrcp.pop %v980
      %v984 = vmul.f32 %v974, %v983
      %985 = vrot.lane.b32.xlu0 %v789, 64
      %v986 = vpop.permute.xlu0 %985
      %v989 = vsel %vm962, %v982, 0
      %991 = vmatprep.subr.mxu0 0.0
      %992 = vmatpush1.msra.mxu0 %v986
      %993 = vmatprep.subr.mxu0 0.0
      %994 = vmatpush1.msra.mxu0 0.0
      %995 = vmatprep.subr.mxu0 0.0
      %996 = vmatpush1.msra.mxu0 0.0
      %997 = vmatprep.subr.mxu0 0.0
      %998 = vmatpush1.msra.mxu0 0.0
      %999 = vmatprep.subr.mxu0 0.0
      %1000 = vmatpush1.msra.mxu0 0.0
      %1001 = vmatprep.subr.mxu0 0.0
      %1002 = vmatpush1.msra.mxu0 0.0
      %1003 = vmatprep.subr.mxu0 0.0
      %1004 = vmatpush1.msra.mxu0 0.0
      %1005 = vmatprep.subr.mxu0 0.0
      %1006 = vmatpush1.msra.mxu0 0.0
      %1007 = vmatprep.subr.mxu0 0.0
      %1008 = vmatpush1.msra.mxu0 0.0
      %1009 = vmatprep.subr.mxu0 0.0
      %1010 = vmatpush1.msra.mxu0 0.0
      %1011 = vmatprep.subr.mxu0 0.0
      %1012 = vmatpush1.msra.mxu0 0.0
      %1013 = vmatprep.subr.mxu0 0.0
      %1014 = vmatpush1.msra.mxu0 0.0
      %1015 = vmatprep.subr.mxu0 0.0
      %1016 = vmatpush1.msra.mxu0 0.0
      %1017 = vmatprep.subr.mxu0 0.0
      %1018 = vmatpush1.msra.mxu0 0.0
      %1019 = vmatprep.subr.mxu0 0.0
      %1020 = vmatpush1.msra.mxu0 0.0
      %1021 = vmatprep.subr.mxu0 0.0
      %1022 = vmatpush1.msra.mxu0 0.0
      %1023 = vmatprep.subr.mxu0 0.0
      %1024 = vmatpush1.msra.mxu0 0.0
      %1025 = vmatprep.subr.mxu0 0.0
      %1026 = vmatpush1.msra.mxu0 0.0
      %1027 = vmatprep.subr.mxu0 0.0
      %1028 = vmatpush1.msra.mxu0 0.0
      %1029 = vmatprep.subr.mxu0 0.0
      %1030 = vmatpush1.msra.mxu0 0.0
      %1031 = vmatprep.subr.mxu0 0.0
      %1032 = vmatpush1.msra.mxu0 0.0
      %1033 = vmatprep.subr.mxu0 0.0
      %1034 = vmatpush1.msra.mxu0 0.0
      %1035 = vmatprep.subr.mxu0 0.0
      %1036 = vmatpush1.msra.mxu0 0.0
      %1037 = vmatprep.subr.mxu0 0.0
      %1038 = vmatpush1.msra.mxu0 0.0
      %1039 = vmatprep.subr.mxu0 0.0
      %1040 = vmatpush1.msra.mxu0 0.0
      %1041 = vmatprep.subr.mxu0 0.0
      %1042 = vmatpush1.msra.mxu0 0.0
      %1043 = vmatprep.subr.mxu0 0.0
      %1044 = vmatpush1.msra.mxu0 0.0
      %1045 = vmatprep.subr.mxu0 0.0
      %1046 = vmatpush1.msra.mxu0 0.0
      %1047 = vmatprep.subr.mxu0 0.0
      %1048 = vmatpush1.msra.mxu0 0.0
      %1049 = vmatprep.subr.mxu0 0.0
      %1050 = vmatpush1.msra.mxu0 0.0
      %1051 = vmatprep.subr.mxu0 0.0
      %1052 = vmatpush1.msra.mxu0 0.0
      %1053 = vmatprep.subr.mxu0 0.0
      %1054 = vmatpush1.msra.mxu0 0.0
      %1055 = vmatprep.mubr.f32.mxu0 0.0
      %1056 = vmatmul.mubr.f32.gmra.mrb[0].mxu0 %v989
      %v1057 = vpop.f32.mrb[0].mxu0
      %v1058 = vadd.f32 0.0, %v1057
      %v1059 = vpop.f32.mrb[0].mxu0
      %1060 = vdwg.mxu0
      %1061 = vrot.lane.b32.xlu0 %v794, 64
      %v1062 = vpop.permute.xlu0 %1061
      %v1065 = vsel %vm962, %v984, 0
      %1067 = vmatprep.subr.mxu0 0.0
      %1068 = vmatpush1.msra.mxu0 %v1062
      %1069 = vmatprep.subr.mxu0 0.0
      %1070 = vmatpush1.msra.mxu0 0.0
      %1071 = vmatprep.subr.mxu0 0.0
      %1072 = vmatpush1.msra.mxu0 0.0
      %1073 = vmatprep.subr.mxu0 0.0
      %1074 = vmatpush1.msra.mxu0 0.0
      %1075 = vmatprep.subr.mxu0 0.0
      %1076 = vmatpush1.msra.mxu0 0.0
      %1077 = vmatprep.subr.mxu0 0.0
      %1078 = vmatpush1.msra.mxu0 0.0
      %1079 = vmatprep.subr.mxu0 0.0
      %1080 = vmatpush1.msra.mxu0 0.0
      %1081 = vmatprep.subr.mxu0 0.0
      %1082 = vmatpush1.msra.mxu0 0.0
      %1083 = vmatprep.subr.mxu0 0.0
      %1084 = vmatpush1.msra.mxu0 0.0
      %1085 = vmatprep.subr.mxu0 0.0
      %1086 = vmatpush1.msra.mxu0 0.0
      %1087 = vmatprep.subr.mxu0 0.0
      %1088 = vmatpush1.msra.mxu0 0.0
      %1089 = vmatprep.subr.mxu0 0.0
      %1090 = vmatpush1.msra.mxu0 0.0
      %1091 = vmatprep.subr.mxu0 0.0
      %1092 = vmatpush1.msra.mxu0 0.0
      %1093 = vmatprep.subr.mxu0 0.0
      %1094 = vmatpush1.msra.mxu0 0.0
      %1095 = vmatprep.subr.mxu0 0.0
      %1096 = vmatpush1.msra.mxu0 0.0
      %1097 = vmatprep.subr.mxu0 0.0
      %1098 = vmatpush1.msra.mxu0 0.0
      %1099 = vmatprep.subr.mxu0 0.0
      %1100 = vmatpush1.msra.mxu0 0.0
      %1101 = vmatprep.subr.mxu0 0.0
      %1102 = vmatpush1.msra.mxu0 0.0
      %1103 = vmatprep.subr.mxu0 0.0
      %1104 = vmatpush1.msra.mxu0 0.0
      %1105 = vmatprep.subr.mxu0 0.0
      %1106 = vmatpush1.msra.mxu0 0.0
      %1107 = vmatprep.subr.mxu0 0.0
      %1108 = vmatpush1.msra.mxu0 0.0
      %1109 = vmatprep.subr.mxu0 0.0
      %1110 = vmatpush1.msra.mxu0 0.0
      %1111 = vmatprep.subr.mxu0 0.0
      %1112 = vmatpush1.msra.mxu0 0.0
      %1113 = vmatprep.subr.mxu0 0.0
      %1114 = vmatpush1.msra.mxu0 0.0
      %1115 = vmatprep.subr.mxu0 0.0
      %1116 = vmatpush1.msra.mxu0 0.0
      %1117 = vmatprep.subr.mxu0 0.0
      %1118 = vmatpush1.msra.mxu0 0.0
      %1119 = vmatprep.subr.mxu0 0.0
      %1120 = vmatpush1.msra.mxu0 0.0
      %1121 = vmatprep.subr.mxu0 0.0
      %1122 = vmatpush1.msra.mxu0 0.0
      %1123 = vmatprep.subr.mxu0 0.0
      %1124 = vmatpush1.msra.mxu0 0.0
      %1125 = vmatprep.subr.mxu0 0.0
      %1126 = vmatpush1.msra.mxu0 0.0
      %1127 = vmatprep.subr.mxu0 0.0
      %1128 = vmatpush1.msra.mxu0 0.0
      %1129 = vmatprep.subr.mxu0 0.0
      %1130 = vmatpush1.msra.mxu0 0.0
      %1131 = vmatprep.mubr.f32.mxu0 0.0
      %1132 = vmatmul.mubr.f32.gmra.mrb[0].mxu0 %v1065
      %v1133 = vpop.f32.mrb[0].mxu0
      %v1134 = vadd.f32 0.0, %v1133
      %v1135 = vpop.f32.mrb[0].mxu0
      %1136 = vdwg.mxu0
      %v1137 = vld [vmem:[%s616] sm:$0xff]
      %v1138 = vld [vmem:[%s616 + $0x8] sm:$0xff]
      %1139 = vrot.lane.b32.xlu0 %v797, 112
      %v1140 = vpop.permute.xlu0 %1139
      %1141 = vrot.lane.b32.xlu0 %v789, 80
      %v1142 = vpop.permute.xlu0 %1141
      %v1143 = vsel %vm808, %v1140, 0
      %v1145 = vsel %vm808, %v1142, 0
      %1147 = vmatprep.subr.mxu0 0.0
      %1148 = vmatpush1.xpose.msra.mxu0 %v1145
      %1149 = vmatprep.subr.mxu0 0.0
      %1150 = vmatpush1.xpose.msra.mxu0 0.0
      %1151 = vmatprep.subr.mxu0 0.0
      %1152 = vmatpush1.xpose.msra.mxu0 0.0
      %1153 = vmatprep.subr.mxu0 0.0
      %1154 = vmatpush1.xpose.msra.mxu0 0.0
      %1155 = vmatprep.subr.mxu0 0.0
      %1156 = vmatpush1.xpose.msra.mxu0 0.0
      %1157 = vmatprep.subr.mxu0 0.0
      %1158 = vmatpush1.xpose.msra.mxu0 0.0
      %1159 = vmatprep.subr.mxu0 0.0
      %1160 = vmatpush1.xpose.msra.mxu0 0.0
      %1161 = vmatprep.subr.mxu0 0.0
      %1162 = vmatpush1.xpose.msra.mxu0 0.0
      %1163 = vmatprep.subr.mxu0 0.0
      %1164 = vmatpush1.xpose.msra.mxu0 0.0
      %1165 = vmatprep.subr.mxu0 0.0
      %1166 = vmatpush1.xpose.msra.mxu0 0.0
      %1167 = vmatprep.subr.mxu0 0.0
      %1168 = vmatpush1.xpose.msra.mxu0 0.0
      %1169 = vmatprep.subr.mxu0 0.0
      %1170 = vmatpush1.xpose.msra.mxu0 0.0
      %1171 = vmatprep.subr.mxu0 0.0
      %1172 = vmatpush1.xpose.msra.mxu0 0.0
      %1173 = vmatprep.subr.mxu0 0.0
      %1174 = vmatpush1.xpose.msra.mxu0 0.0
      %1175 = vmatprep.subr.mxu0 0.0
      %1176 = vmatpush1.xpose.msra.mxu0 0.0
      %1177 = vmatprep.subr.mxu0 0.0
      %1178 = vmatpush1.xpose.msra.mxu0 0.0
      %1179 = vmatprep.subr.mxu0 0.0
      %1180 = vmatpush1.xpose.msra.mxu0 0.0
      %1181 = vmatprep.subr.mxu0 0.0
      %1182 = vmatpush1.xpose.msra.mxu0 0.0
      %1183 = vmatprep.subr.mxu0 0.0
      %1184 = vmatpush1.xpose.msra.mxu0 0.0
      %1185 = vmatprep.subr.mxu0 0.0
      %1186 = vmatpush1.xpose.msra.mxu0 0.0
      %1187 = vmatprep.subr.mxu0 0.0
      %1188 = vmatpush1.xpose.msra.mxu0 0.0
      %1189 = vmatprep.subr.mxu0 0.0
      %1190 = vmatpush1.xpose.msra.mxu0 0.0
      %1191 = vmatprep.subr.mxu0 0.0
      %1192 = vmatpush1.xpose.msra.mxu0 0.0
      %1193 = vmatprep.subr.mxu0 0.0
      %1194 = vmatpush1.xpose.msra.mxu0 0.0
      %1195 = vmatprep.subr.mxu0 0.0
      %1196 = vmatpush1.xpose.msra.mxu0 0.0
      %1197 = vmatprep.subr.mxu0 0.0
      %1198 = vmatpush1.xpose.msra.mxu0 0.0
      %1199 = vmatprep.subr.mxu0 0.0
      %1200 = vmatpush1.xpose.msra.mxu0 0.0
      %1201 = vmatprep.subr.mxu0 0.0
      %1202 = vmatpush1.xpose.msra.mxu0 0.0
      %1203 = vmatprep.subr.mxu0 0.0
      %1204 = vmatpush1.xpose.msra.mxu0 0.0
      %1205 = vmatprep.subr.mxu0 0.0
      %1206 = vmatpush1.xpose.msra.mxu0 0.0
      %1207 = vmatprep.subr.mxu0 0.0
      %1208 = vmatpush1.xpose.msra.mxu0 0.0
      %1209 = vmatprep.subr.mxu0 0.0
      %1210 = vmatpush1.xpose.msra.mxu0 0.0
      %1211 = vmatprep.mubr.f32.mxu0 0.0
      %1212 = vmatmul.mubr.f32.gmra.mrb[0].mxu0 %v1143
      %v1213 = vpop.f32.mrb[0].mxu0
      %v1214 = vadd.f32 %v804, %v1213
      %v1215 = vpop.f32.mrb[0].mxu0
      %1216 = vdwg.mxu0
      %1217 = vrot.lane.b32.xlu0 %v798, 112
      %v1218 = vpop.permute.xlu0 %1217
      %1219 = vrot.lane.b32.xlu0 %v794, 80
      %v1220 = vpop.permute.xlu0 %1219
      %v1221 = vsel %vm808, %v1218, 0
      %v1223 = vsel %vm808, %v1220, 0
      %1225 = vmatprep.subr.mxu0 0.0
      %1226 = vmatpush1.xpose.msra.mxu0 %v1223
      %1227 = vmatprep.subr.mxu0 0.0
      %1228 = vmatpush1.xpose.msra.mxu0 0.0
      %1229 = vmatprep.subr.mxu0 0.0
      %1230 = vmatpush1.xpose.msra.mxu0 0.0
      %1231 = vmatprep.subr.mxu0 0.0
      %1232 = vmatpush1.xpose.msra.mxu0 0.0
      %1233 = vmatprep.subr.mxu0 0.0
      %1234 = vmatpush1.xpose.msra.mxu0 0.0
      %1235 = vmatprep.subr.mxu0 0.0
      %1236 = vmatpush1.xpose.msra.mxu0 0.0
      %1237 = vmatprep.subr.mxu0 0.0
      %1238 = vmatpush1.xpose.msra.mxu0 0.0
      %1239 = vmatprep.subr.mxu0 0.0
      %1240 = vmatpush1.xpose.msra.mxu0 0.0
      %1241 = vmatprep.subr.mxu0 0.0
      %1242 = vmatpush1.xpose.msra.mxu0 0.0
      %1243 = vmatprep.subr.mxu0 0.0
      %1244 = vmatpush1.xpose.msra.mxu0 0.0
      %1245 = vmatprep.subr.mxu0 0.0
      %1246 = vmatpush1.xpose.msra.mxu0 0.0
      %1247 = vmatprep.subr.mxu0 0.0
      %1248 = vmatpush1.xpose.msra.mxu0 0.0
      %1249 = vmatprep.subr.mxu0 0.0
      %1250 = vmatpush1.xpose.msra.mxu0 0.0
      %1251 = vmatprep.subr.mxu0 0.0
      %1252 = vmatpush1.xpose.msra.mxu0 0.0
      %1253 = vmatprep.subr.mxu0 0.0
      %1254 = vmatpush1.xpose.msra.mxu0 0.0
      %1255 = vmatprep.subr.mxu0 0.0
      %1256 = vmatpush1.xpose.msra.mxu0 0.0
      %1257 = vmatprep.subr.mxu0 0.0
      %1258 = vmatpush1.xpose.msra.mxu0 0.0
      %1259 = vmatprep.subr.mxu0 0.0
      %1260 = vmatpush1.xpose.msra.mxu0 0.0
      %1261 = vmatprep.subr.mxu0 0.0
      %1262 = vmatpush1.xpose.msra.mxu0 0.0
      %1263 = vmatprep.subr.mxu0 0.0
      %1264 = vmatpush1.xpose.msra.mxu0 0.0
      %1265 = vmatprep.subr.mxu0 0.0
      %1266 = vmatpush1.xpose.msra.mxu0 0.0
      %1267 = vmatprep.subr.mxu0 0.0
      %1268 = vmatpush1.xpose.msra.mxu0 0.0
      %1269 = vmatprep.subr.mxu0 0.0
      %1270 = vmatpush1.xpose.msra.mxu0 0.0
      %1271 = vmatprep.subr.mxu0 0.0
      %1272 = vmatpush1.xpose.msra.mxu0 0.0
      %1273 = vmatprep.subr.mxu0 0.0
      %1274 = vmatpush1.xpose.msra.mxu0 0.0
      %1275 = vmatprep.subr.mxu0 0.0
      %1276 = vmatpush1.xpose.msra.mxu0 0.0
      %1277 = vmatprep.subr.mxu0 0.0
      %1278 = vmatpush1.xpose.msra.mxu0 0.0
      %1279 = vmatprep.subr.mxu0 0.0
      %1280 = vmatpush1.xpose.msra.mxu0 0.0
      %1281 = vmatprep.subr.mxu0 0.0
      %1282 = vmatpush1.xpose.msra.mxu0 0.0
      %1283 = vmatprep.subr.mxu0 0.0
      %1284 = vmatpush1.xpose.msra.mxu0 0.0
      %1285 = vmatprep.subr.mxu0 0.0
      %1286 = vmatpush1.xpose.msra.mxu0 0.0
      %1287 = vmatprep.subr.mxu0 0.0
      %1288 = vmatpush1.xpose.msra.mxu0 0.0
      %1289 = vmatprep.mubr.f32.mxu0 0.0
      %1290 = vmatmul.mubr.f32.gmra.mrb[0].mxu0 %v1221
      %v1291 = vpop.f32.mrb[0].mxu0
      %v1292 = vadd.f32 %v804, %v1291
      %v1293 = vpop.f32.mrb[0].mxu0
      %1294 = vdwg.mxu0
      %v1295 = vsel %vm962, %v1214, -inf
      %1296 = vmax.xlane.f32.xlu0 %v1295
      %v1297 = vpop.xlane.xlu0 %1296
      %v1298 = vsel %vm962, %v1292, -inf
      %1299 = vmax.xlane.f32.xlu0 %v1298
      %v1300 = vpop.xlane.xlu0 %1299
      %v1301 = vsub.f32 %v1214, %v1297
      %v1302 = vsub.f32 %v1292, %v1300
      %v1303 = vmul.f32 %v1301, 1.442695
      %v1304 = vpow.pop %v1303
      %v1305 = vmul.f32 %v1302, 1.442695
      %v1306 = vpow.pop %v1305
      %v1307 = vsel %vm962, %v1304, 0.0
      %1308 = vadd.xlane.f32.xlu0 %v1307
      %v1309 = vpop.xlane.xlu0 %1308
      %v1310 = vsel %vm962, %v1306, 0.0
      %1311 = vadd.xlane.f32.xlu0 %v1310
      %v1312 = vpop.xlane.xlu0 %1311
      %v1313 = vrcp.pop %v1309
      %v1314 = vmul.f32 %v1304, %v1313
      %v1315 = vrcp.pop %v1312
      %v1316 = vmul.f32 %v1306, %v1315
      %1317 = vrot.lane.b32.xlu0 %v789, 48
      %v1318 = vpop.permute.xlu0 %1317
      %v1321 = vsel %vm962, %v1314, 0
      %1323 = vmatprep.subr.mxu0 0.0
      %1324 = vmatpush1.msra.mxu0 %v1318
      %1325 = vmatprep.subr.mxu0 0.0
      %1326 = vmatpush1.msra.mxu0 0.0
      %1327 = vmatprep.subr.mxu0 0.0
      %1328 = vmatpush1.msra.mxu0 0.0
      %1329 = vmatprep.subr.mxu0 0.0
      %1330 = vmatpush1.msra.mxu0 0.0
      %1331 = vmatprep.subr.mxu0 0.0
      %1332 = vmatpush1.msra.mxu0 0.0
      %1333 = vmatprep.subr.mxu0 0.0
      %1334 = vmatpush1.msra.mxu0 0.0
      %1335 = vmatprep.subr.mxu0 0.0
      %1336 = vmatpush1.msra.mxu0 0.0
      %1337 = vmatprep.subr.mxu0 0.0
      %1338 = vmatpush1.msra.mxu0 0.0
      %1339 = vmatprep.subr.mxu0 0.0
      %1340 = vmatpush1.msra.mxu0 0.0
      %1341 = vmatprep.subr.mxu0 0.0
      %1342 = vmatpush1.msra.mxu0 0.0
      %1343 = vmatprep.subr.mxu0 0.0
      %1344 = vmatpush1.msra.mxu0 0.0
      %1345 = vmatprep.subr.mxu0 0.0
      %1346 = vmatpush1.msra.mxu0 0.0
      %1347 = vmatprep.subr.mxu0 0.0
      %1348 = vmatpush1.msra.mxu0 0.0
      %1349 = vmatprep.subr.mxu0 0.0
      %1350 = vmatpush1.msra.mxu0 0.0
      %1351 = vmatprep.subr.mxu0 0.0
      %1352 = vmatpush1.msra.mxu0 0.0
      %1353 = vmatprep.subr.mxu0 0.0
      %1354 = vmatpush1.msra.mxu0 0.0
      %1355 = vmatprep.subr.mxu0 0.0
      %1356 = vmatpush1.msra.mxu0 0.0
      %1357 = vmatprep.subr.mxu0 0.0
      %1358 = vmatpush1.msra.mxu0 0.0
      %1359 = vmatprep.subr.mxu0 0.0
      %1360 = vmatpush1.msra.mxu0 0.0
      %1361 = vmatprep.subr.mxu0 0.0
      %1362 = vmatpush1.msra.mxu0 0.0
      %1363 = vmatprep.subr.mxu0 0.0
      %1364 = vmatpush1.msra.mxu0 0.0
      %1365 = vmatprep.subr.mxu0 0.0
      %1366 = vmatpush1.msra.mxu0 0.0
      %1367 = vmatprep.subr.mxu0 0.0
      %1368 = vmatpush1.msra.mxu0 0.0
      %1369 = vmatprep.subr.mxu0 0.0
      %1370 = vmatpush1.msra.mxu0 0.0
      %1371 = vmatprep.subr.mxu0 0.0
      %1372 = vmatpush1.msra.mxu0 0.0
      %1373 = vmatprep.subr.mxu0 0.0
      %1374 = vmatpush1.msra.mxu0 0.0
      %1375 = vmatprep.subr.mxu0 0.0
      %1376 = vmatpush1.msra.mxu0 0.0
      %1377 = vmatprep.subr.mxu0 0.0
      %1378 = vmatpush1.msra.mxu0 0.0
      %1379 = vmatprep.subr.mxu0 0.0
      %1380 = vmatpush1.msra.mxu0 0.0
      %1381 = vmatprep.subr.mxu0 0.0
      %1382 = vmatpush1.msra.mxu0 0.0
      %1383 = vmatprep.subr.mxu0 0.0
      %1384 = vmatpush1.msra.mxu0 0.0
      %1385 = vmatprep.subr.mxu0 0.0
      %1386 = vmatpush1.msra.mxu0 0.0
      %1387 = vmatprep.mubr.f32.mxu0 0.0
      %1388 = vmatmul.mubr.f32.gmra.mrb[0].mxu0 %v1321
      %v1389 = vpop.f32.mrb[0].mxu0
      %v1390 = vadd.f32 0.0, %v1389
      %v1391 = vpop.f32.mrb[0].mxu0
      %1392 = vdwg.mxu0
      %1393 = vrot.lane.b32.xlu0 %v794, 48
      %v1394 = vpop.permute.xlu0 %1393
      %v1397 = vsel %vm962, %v1316, 0
      %1399 = vmatprep.subr.mxu0 0.0
      %1400 = vmatpush1.msra.mxu0 %v1394
      %1401 = vmatprep.subr.mxu0 0.0
      %1402 = vmatpush1.msra.mxu0 0.0
      %1403 = vmatprep.subr.mxu0 0.0
      %1404 = vmatpush1.msra.mxu0 0.0
      %1405 = vmatprep.subr.mxu0 0.0
      %1406 = vmatpush1.msra.mxu0 0.0
      %1407 = vmatprep.subr.mxu0 0.0
      %1408 = vmatpush1.msra.mxu0 0.0
      %1409 = vmatprep.subr.mxu0 0.0
      %1410 = vmatpush1.msra.mxu0 0.0
      %1411 = vmatprep.subr.mxu0 0.0
      %1412 = vmatpush1.msra.mxu0 0.0
      %1413 = vmatprep.subr.mxu0 0.0
      %1414 = vmatpush1.msra.mxu0 0.0
      %1415 = vmatprep.subr.mxu0 0.0
      %1416 = vmatpush1.msra.mxu0 0.0
      %1417 = vmatprep.subr.mxu0 0.0
      %1418 = vmatpush1.msra.mxu0 0.0
      %1419 = vmatprep.subr.mxu0 0.0
      %1420 = vmatpush1.msra.mxu0 0.0
      %1421 = vmatprep.subr.mxu0 0.0
      %1422 = vmatpush1.msra.mxu0 0.0
      %1423 = vmatprep.subr.mxu0 0.0
      %1424 = vmatpush1.msra.mxu0 0.0
      %1425 = vmatprep.subr.mxu0 0.0
      %1426 = vmatpush1.msra.mxu0 0.0
      %1427 = vmatprep.subr.mxu0 0.0
      %1428 = vmatpush1.msra.mxu0 0.0
      %1429 = vmatprep.subr.mxu0 0.0
      %1430 = vmatpush1.msra.mxu0 0.0
      %1431 = vmatprep.subr.mxu0 0.0
      %1432 = vmatpush1.msra.mxu0 0.0
      %1433 = vmatprep.subr.mxu0 0.0
      %1434 = vmatpush1.msra.mxu0 0.0
      %1435 = vmatprep.subr.mxu0 0.0
      %1436 = vmatpush1.msra.mxu0 0.0
      %1437 = vmatprep.subr.mxu0 0.0
      %1438 = vmatpush1.msra.mxu0 0.0
      %1439 = vmatprep.subr.mxu0 0.0
      %1440 = vmatpush1.msra.mxu0 0.0
      %1441 = vmatprep.subr.mxu0 0.0
      %1442 = vmatpush1.msra.mxu0 0.0
      %1443 = vmatprep.subr.mxu0 0.0
      %1444 = vmatpush1.msra.mxu0 0.0
      %1445 = vmatprep.subr.mxu0 0.0
      %1446 = vmatpush1.msra.mxu0 0.0
      %1447 = vmatprep.subr.mxu0 0.0
      %1448 = vmatpush1.msra.mxu0 0.0
      %1449 = vmatprep.subr.mxu0 0.0
      %1450 = vmatpush1.msra.mxu0 0.0
      %1451 = vmatprep.subr.mxu0 0.0
      %1452 = vmatpush1.msra.mxu0 0.0
      %1453 = vmatprep.subr.mxu0 0.0
      %1454 = vmatpush1.msra.mxu0 0.0
      %1455 = vmatprep.subr.mxu0 0.0
      %1456 = vmatpush1.msra.mxu0 0.0
      %1457 = vmatprep.subr.mxu0 0.0
      %1458 = vmatpush1.msra.mxu0 0.0
      %1459 = vmatprep.subr.mxu0 0.0
      %1460 = vmatpush1.msra.mxu0 0.0
      %1461 = vmatprep.subr.mxu0 0.0
      %1462 = vmatpush1.msra.mxu0 0.0
      %1463 = vmatprep.mubr.f32.mxu0 0.0
      %1464 = vmatmul.mubr.f32.gmra.mrb[0].mxu0 %v1397
      %v1465 = vpop.f32.mrb[0].mxu0
      %v1466 = vadd.f32 0.0, %v1465
      %v1467 = vpop.f32.mrb[0].mxu0
      %1468 = vdwg.mxu0
      %s1469 = scalar_lea.vmem %s616, 16
      %v1470 = vld [vmem:[%s1469] sm:$0xff]
      %v1471 = vld [vmem:[%s1469 + $0x8] sm:$0xff]
      %v1473 = vsel %vm808, %v1390, 0
      %v1476 = vsel %vm808, %v1466, 0
      %1478 = vmatprep.subr.mxu0 0.0
      %1479 = vmatpush1.msra.mxu0 %v1470
      %1480 = vmatprep.subr.mxu0 0.0
      %1481 = vmatpush1.msra.mxu0 %v1471
      %1482 = vmatprep.subr.mxu0 0.0
      %1483 = vmatpush1.msra.mxu0 0.0
      %1484 = vmatprep.subr.mxu0 0.0
      %1485 = vmatpush1.msra.mxu0 0.0
      %1486 = vmatprep.subr.mxu0 0.0
      %1487 = vmatpush1.msra.mxu0 0.0
      %1488 = vmatprep.subr.mxu0 0.0
      %1489 = vmatpush1.msra.mxu0 0.0
      %1490 = vmatprep.subr.mxu0 0.0
      %1491 = vmatpush1.msra.mxu0 0.0
      %1492 = vmatprep.subr.mxu0 0.0
      %1493 = vmatpush1.msra.mxu0 0.0
      %1494 = vmatprep.subr.mxu0 0.0
      %1495 = vmatpush1.msra.mxu0 0.0
      %1496 = vmatprep.subr.mxu0 0.0
      %1497 = vmatpush1.msra.mxu0 0.0
      %1498 = vmatprep.subr.mxu0 0.0
      %1499 = vmatpush1.msra.mxu0 0.0
      %1500 = vmatprep.subr.mxu0 0.0
      %1501 = vmatpush1.msra.mxu0 0.0
      %1502 = vmatprep.subr.mxu0 0.0
      %1503 = vmatpush1.msra.mxu0 0.0
      %1504 = vmatprep.subr.mxu0 0.0
      %1505 = vmatpush1.msra.mxu0 0.0
      %1506 = vmatprep.subr.mxu0 0.0
      %1507 = vmatpush1.msra.mxu0 0.0
      %1508 = vmatprep.subr.mxu0 0.0
      %1509 = vmatpush1.msra.mxu0 0.0
      %1510 = vmatprep.subr.mxu0 0.0
      %1511 = vmatpush1.msra.mxu0 0.0
      %1512 = vmatprep.subr.mxu0 0.0
      %1513 = vmatpush1.msra.mxu0 0.0
      %1514 = vmatprep.subr.mxu0 0.0
      %1515 = vmatpush1.msra.mxu0 0.0
      %1516 = vmatprep.subr.mxu0 0.0
      %1517 = vmatpush1.msra.mxu0 0.0
      %1518 = vmatprep.subr.mxu0 0.0
      %1519 = vmatpush1.msra.mxu0 0.0
      %1520 = vmatprep.subr.mxu0 0.0
      %1521 = vmatpush1.msra.mxu0 0.0
      %1522 = vmatprep.subr.mxu0 0.0
      %1523 = vmatpush1.msra.mxu0 0.0
      %1524 = vmatprep.subr.mxu0 0.0
      %1525 = vmatpush1.msra.mxu0 0.0
      %1526 = vmatprep.subr.mxu0 0.0
      %1527 = vmatpush1.msra.mxu0 0.0
      %1528 = vmatprep.subr.mxu0 0.0
      %1529 = vmatpush1.msra.mxu0 0.0
      %1530 = vmatprep.subr.mxu0 0.0
      %1531 = vmatpush1.msra.mxu0 0.0
      %1532 = vmatprep.subr.mxu0 0.0
      %1533 = vmatpush1.msra.mxu0 0.0
      %1534 = vmatprep.subr.mxu0 0.0
      %1535 = vmatpush1.msra.mxu0 0.0
      %1536 = vmatprep.subr.mxu0 0.0
      %1537 = vmatpush1.msra.mxu0 0.0
      %1538 = vmatprep.subr.mxu0 0.0
      %1539 = vmatpush1.msra.mxu0 0.0
      %1540 = vmatprep.subr.mxu0 0.0
      %1541 = vmatpush1.msra.mxu0 0.0
      %1542 = vmatprep.mubr.f32.mxu0 0.0
      %1543 = vmatmul.mubr.f32.gmra.mrb[0].mxu0 %v1473
      %v1544 = vpop.f32.mrb[0].mxu0
      %v1545 = vadd.f32 0.0, %v1544
      %v1546 = vpop.f32.mrb[0].mxu0
      %1547 = vmatprep.mubr.f32.mxu0 0.0
      %1548 = vmatmul.mubr.f32.gmra.mrb[0].mxu0 %v1476
      %v1549 = vpop.f32.mrb[0].mxu0
      %v1550 = vadd.f32 0.0, %v1549
      %v1551 = vpop.f32.mrb[0].mxu0
      %1552 = vdwg.mxu0
      %v1554 = vsel %vm808, %v1058, 0
      %v1557 = vsel %vm808, %v1134, 0
      %1559 = vmatprep.subr.mxu0 0.0
      %1560 = vmatpush1.msra.mxu0 %v1137
      %1561 = vmatprep.subr.mxu0 0.0
      %1562 = vmatpush1.msra.mxu0 %v1138
      %1563 = vmatprep.subr.mxu0 0.0
      %1564 = vmatpush1.msra.mxu0 0.0
      %1565 = vmatprep.subr.mxu0 0.0
      %1566 = vmatpush1.msra.mxu0 0.0
      %1567 = vmatprep.subr.mxu0 0.0
      %1568 = vmatpush1.msra.mxu0 0.0
      %1569 = vmatprep.subr.mxu0 0.0
      %1570 = vmatpush1.msra.mxu0 0.0
      %1571 = vmatprep.subr.mxu0 0.0
      %1572 = vmatpush1.msra.mxu0 0.0
      %1573 = vmatprep.subr.mxu0 0.0
      %1574 = vmatpush1.msra.mxu0 0.0
      %1575 = vmatprep.subr.mxu0 0.0
      %1576 = vmatpush1.msra.mxu0 0.0
      %1577 = vmatprep.subr.mxu0 0.0
      %1578 = vmatpush1.msra.mxu0 0.0
      %1579 = vmatprep.subr.mxu0 0.0
      %1580 = vmatpush1.msra.mxu0 0.0
      %1581 = vmatprep.subr.mxu0 0.0
      %1582 = vmatpush1.msra.mxu0 0.0
      %1583 = vmatprep.subr.mxu0 0.0
      %1584 = vmatpush1.msra.mxu0 0.0
      %1585 = vmatprep.subr.mxu0 0.0
      %1586 = vmatpush1.msra.mxu0 0.0
      %1587 = vmatprep.subr.mxu0 0.0
      %1588 = vmatpush1.msra.mxu0 0.0
      %1589 = vmatprep.subr.mxu0 0.0
      %1590 = vmatpush1.msra.mxu0 0.0
      %1591 = vmatprep.subr.mxu0 0.0
      %1592 = vmatpush1.msra.mxu0 0.0
      %1593 = vmatprep.subr.mxu0 0.0
      %1594 = vmatpush1.msra.mxu0 0.0
      %1595 = vmatprep.subr.mxu0 0.0
      %1596 = vmatpush1.msra.mxu0 0.0
      %1597 = vmatprep.subr.mxu0 0.0
      %1598 = vmatpush1.msra.mxu0 0.0
      %1599 = vmatprep.subr.mxu0 0.0
      %1600 = vmatpush1.msra.mxu0 0.0
      %1601 = vmatprep.subr.mxu0 0.0
      %1602 = vmatpush1.msra.mxu0 0.0
      %1603 = vmatprep.subr.mxu0 0.0
      %1604 = vmatpush1.msra.mxu0 0.0
      %1605 = vmatprep.subr.mxu0 0.0
      %1606 = vmatpush1.msra.mxu0 0.0
      %1607 = vmatprep.subr.mxu0 0.0
      %1608 = vmatpush1.msra.mxu0 0.0
      %1609 = vmatprep.subr.mxu0 0.0
      %1610 = vmatpush1.msra.mxu0 0.0
      %1611 = vmatprep.subr.mxu0 0.0
      %1612 = vmatpush1.msra.mxu0 0.0
      %1613 = vmatprep.subr.mxu0 0.0
      %1614 = vmatpush1.msra.mxu0 0.0
      %1615 = vmatprep.subr.mxu0 0.0
      %1616 = vmatpush1.msra.mxu0 0.0
      %1617 = vmatprep.subr.mxu0 0.0
      %1618 = vmatpush1.msra.mxu0 0.0
      %1619 = vmatprep.subr.mxu0 0.0
      %1620 = vmatpush1.msra.mxu0 0.0
      %1621 = vmatprep.subr.mxu0 0.0
      %1622 = vmatpush1.msra.mxu0 0.0
      %1623 = vmatprep.mubr.f32.mxu0 0.0
      %1624 = vmatmul.mubr.f32.gmra.mrb[0].mxu0 %v1554
      %v1625 = vpop.f32.mrb[0].mxu0
      %v1626 = vadd.f32 %v1545, %v1625
      %v1627 = vpop.f32.mrb[0].mxu0
      %1628 = vmatprep.mubr.f32.mxu0 0.0
      %1629 = vmatmul.mubr.f32.gmra.mrb[0].mxu0 %v1557
      %v1630 = vpop.f32.mrb[0].mxu0
      %v1631 = vadd.f32 %v1550, %v1630
      %v1632 = vpop.f32.mrb[0].mxu0
      %1633 = vdwg.mxu0
      %v1634 = vadd.f32 %v657, %v1626
      %v1635 = vadd.f32 %v658, %v1631
      %v1636 = vld [vmem:[%s619] sm:$0x1]
      %v1638 = vlaneseq
      %v1639 = vshrl.u32 %v1638, 7
      %v1640 = vsub.s32 0, %v1639
      %v1641 = vrot.slane %v1636, %v1640
      %v1643 = vadd.f32 %v1634, %v1641
      %v1644 = vadd.f32 %v1635, %v1641
      %v1645 = vld [vmem:[%s622] sm:$0x1]
      %v1646 = vld [vmem:[%s625] sm:$0x1]
      %v1647 = vsel %vm661, %v1643, 0.0
      %1648 = vadd.xlane.f32.xlu0 %v1647
      %v1649 = vpop.xlane.xlu0 %1648
      %v1650 = vsel %vm661, %v1644, 0.0
      %1651 = vadd.xlane.f32.xlu0 %v1650
      %v1652 = vpop.xlane.xlu0 %1651
      %v1653 = vmul.f32 %v1649, %v668
      %v1654 = vmul.f32 %v1652, %v668
      %v1655 = vsub.f32 %v1643, %v1653
      %v1656 = vsub.f32 %v1644, %v1654
      %v1657 = vmul.f32 %v1655, %v1655
      %v1658 = vmul.f32 %v1656, %v1656
      %v1659 = vsel %vm661, %v1657, 0.0
      %1660 = vadd.xlane.f32.xlu0 %v1659
      %v1661 = vpop.xlane.xlu0 %1660
      %v1662 = vsel %vm661, %v1658, 0.0
      %1663 = vadd.xlane.f32.xlu0 %v1662
      %v1664 = vpop.xlane.xlu0 %1663
      %v1665 = vmul.f32 %v1661, %v668
      %v1666 = vmul.f32 %v1664, %v668
      %v1667 = vadd.f32 %v1665, 1e-05
      %v1668 = vadd.f32 %v1666, 1e-05
      %v1669 = vrsqrt.pop %v1667
      %v1670 = vrsqrt.pop %v1668
      %v1671 = vmul.f32 %v1655, %v1669
      %v1672 = vmul.f32 %v1656, %v1670
      %v1674 = vlaneseq
      %v1675 = vshrl.u32 %v1674, 7
      %v1676 = vsub.s32 0, %v1675
      %v1677 = vrot.slane %v1645, %v1676
      %v1679 = vmul.f32 %v1671, %v1677
      %v1680 = vmul.f32 %v1672, %v1677
      %v1682 = vlaneseq
      %v1683 = vshrl.u32 %v1682, 7
      %v1684 = vsub.s32 0, %v1683
      %v1685 = vrot.slane %v1646, %v1684
      %v1687 = vadd.f32 %v1679, %v1685
      %v1688 = vadd.f32 %v1680, %v1685
      %v1689 = vld [vmem:[%s630] sm:$0xff]
      %v1690 = vld [vmem:[%s630 + $0x8] sm:$0xff]
      %v1691 = vld [vmem:[%s630 + $0x10] sm:$0xff]
      %v1692 = vld [vmem:[%s630 + $0x18] sm:$0xff]
      %v1693 = vld [vmem:[%s633] sm:$0x1]
      %v1695 = vlaneseq
      %v1696 = vshrl.u32 %v1695, 7
      %v1697 = vsub.s32 0, %v1696
      %v1698 = vrot.slane %v1693, %v1697
      %v1701 = vsel %vm661, %v1687, 0
      %v1704 = vsel %vm661, %v1688, 0
      %1706 = vmatprep.subr.mxu0 0.0
      %1707 = vmatpush1.msra.mxu0 %v1689
      %1708 = vmatprep.subr.mxu0 0.0
      %1709 = vmatpush1.msra.mxu0 %v1690
      %1710 = vmatprep.subr.mxu0 0.0
      %1711 = vmatpush1.msra.mxu0 %v1691
      %1712 = vmatprep.subr.mxu0 0.0
      %1713 = vmatpush1.msra.mxu0 %v1692
      %1714 = vmatprep.subr.mxu0 0.0
      %1715 = vmatpush1.msra.mxu0 0.0
      %1716 = vmatprep.subr.mxu0 0.0
      %1717 = vmatpush1.msra.mxu0 0.0
      %1718 = vmatprep.subr.mxu0 0.0
      %1719 = vmatpush1.msra.mxu0 0.0
      %1720 = vmatprep.subr.mxu0 0.0
      %1721 = vmatpush1.msra.mxu0 0.0
      %1722 = vmatprep.subr.mxu0 0.0
      %1723 = vmatpush1.msra.mxu0 0.0
      %1724 = vmatprep.subr.mxu0 0.0
      %1725 = vmatpush1.msra.mxu0 0.0
      %1726 = vmatprep.subr.mxu0 0.0
      %1727 = vmatpush1.msra.mxu0 0.0
      %1728 = vmatprep.subr.mxu0 0.0
      %1729 = vmatpush1.msra.mxu0 0.0
      %1730 = vmatprep.subr.mxu0 0.0
      %1731 = vmatpush1.msra.mxu0 0.0
      %1732 = vmatprep.subr.mxu0 0.0
      %1733 = vmatpush1.msra.mxu0 0.0
      %1734 = vmatprep.subr.mxu0 0.0
      %1735 = vmatpush1.msra.mxu0 0.0
      %1736 = vmatprep.subr.mxu0 0.0
      %1737 = vmatpush1.msra.mxu0 0.0
      %1738 = vmatprep.subr.mxu0 0.0
      %1739 = vmatpush1.msra.mxu0 0.0
      %1740 = vmatprep.subr.mxu0 0.0
      %1741 = vmatpush1.msra.mxu0 0.0
      %1742 = vmatprep.subr.mxu0 0.0
      %1743 = vmatpush1.msra.mxu0 0.0
      %1744 = vmatprep.subr.mxu0 0.0
      %1745 = vmatpush1.msra.mxu0 0.0
      %1746 = vmatprep.subr.mxu0 0.0
      %1747 = vmatpush1.msra.mxu0 0.0
      %1748 = vmatprep.subr.mxu0 0.0
      %1749 = vmatpush1.msra.mxu0 0.0
      %1750 = vmatprep.subr.mxu0 0.0
      %1751 = vmatpush1.msra.mxu0 0.0
      %1752 = vmatprep.subr.mxu0 0.0
      %1753 = vmatpush1.msra.mxu0 0.0
      %1754 = vmatprep.subr.mxu0 0.0
      %1755 = vmatpush1.msra.mxu0 0.0
      %1756 = vmatprep.subr.mxu0 0.0
      %1757 = vmatpush1.msra.mxu0 0.0
      %1758 = vmatprep.subr.mxu0 0.0
      %1759 = vmatpush1.msra.mxu0 0.0
      %1760 = vmatprep.subr.mxu0 0.0
      %1761 = vmatpush1.msra.mxu0 0.0
      %1762 = vmatprep.subr.mxu0 0.0
      %1763 = vmatpush1.msra.mxu0 0.0
      %1764 = vmatprep.subr.mxu0 0.0
      %1765 = vmatpush1.msra.mxu0 0.0
      %1766 = vmatprep.subr.mxu0 0.0
      %1767 = vmatpush1.msra.mxu0 0.0
      %1768 = vmatprep.subr.mxu0 0.0
      %1769 = vmatpush1.msra.mxu0 0.0
      %1770 = vmatprep.mubr.f32.mxu0 0.0
      %1771 = vmatmul.mubr.f32.gmra.mrb[0].mxu0 %v1701
      %v1772 = vpop.f32.mrb[0].mxu0
      %v1773 = vadd.f32 %v1698, %v1772
      %v1774 = vpop.f32.mrb[0].mxu0
      %1775 = vmatprep.mubr.f32.mxu0 0.0
      %1776 = vmatmul.mubr.f32.gmra.mrb[0].mxu0 %v1704
      %v1777 = vpop.f32.mrb[0].mxu0
      %v1778 = vadd.f32 %v1698, %v1777
      %v1779 = vpop.f32.mrb[0].mxu0
      %1780 = vdwg.mxu0
      %v1781 = vmax.f32 %v1773, 0.0
      %v1782 = vmax.f32 %v1778, 0.0
      %v1783 = vld [vmem:[%s638] sm:$0xff]
      %v1784 = vld [vmem:[%s638 + $0x8] sm:$0xff]
      %v1785 = vld [vmem:[%s638 + $0x10] sm:$0xff]
      %v1786 = vld [vmem:[%s638 + $0x18] sm:$0xff]
      %v1787 = vld [vmem:[%s638 + $0x20] sm:$0xff]
      %v1788 = vld [vmem:[%s638 + $0x28] sm:$0xff]
      %v1789 = vld [vmem:[%s638 + $0x30] sm:$0xff]
      %v1790 = vld [vmem:[%s638 + $0x38] sm:$0xff]
      %v1791 = vld [vmem:[%s641] sm:$0x1]
      %v1793 = vlaneseq
      %v1794 = vshrl.u32 %v1793, 7
      %v1795 = vsub.s32 0, %v1794
      %v1796 = vrot.slane %v1791, %v1795
      %vm1798 = vcmask 523264
      %v1800 = vsel %vm1798, %v1781, 0
      %v1803 = vsel %vm1798, %v1782, 0
      %1805 = vmatprep.subr.mxu0 0.0
      %1806 = vmatpush1.msra.mxu0 %v1783
      %1807 = vmatprep.subr.mxu0 0.0
      %1808 = vmatpush1.msra.mxu0 %v1784
      %1809 = vmatprep.subr.mxu0 0.0
      %1810 = vmatpush1.msra.mxu0 %v1785
      %1811 = vmatprep.subr.mxu0 0.0
      %1812 = vmatpush1.msra.mxu0 %v1786
      %1813 = vmatprep.subr.mxu0 0.0
      %1814 = vmatpush1.msra.mxu0 %v1787
      %1815 = vmatprep.subr.mxu0 0.0
      %1816 = vmatpush1.msra.mxu0 %v1788
      %1817 = vmatprep.subr.mxu0 0.0
      %1818 = vmatpush1.msra.mxu0 %v1789
      %1819 = vmatprep.subr.mxu0 0.0
      %1820 = vmatpush1.msra.mxu0 %v1790
      %1821 = vmatprep.subr.mxu0 0.0
      %1822 = vmatpush1.msra.mxu0 0.0
      %1823 = vmatprep.subr.mxu0 0.0
      %1824 = vmatpush1.msra.mxu0 0.0
      %1825 = vmatprep.subr.mxu0 0.0
      %1826 = vmatpush1.msra.mxu0 0.0
      %1827 = vmatprep.subr.mxu0 0.0
      %1828 = vmatpush1.msra.mxu0 0.0
      %1829 = vmatprep.subr.mxu0 0.0
      %1830 = vmatpush1.msra.mxu0 0.0
      %1831 = vmatprep.subr.mxu0 0.0
      %1832 = vmatpush1.msra.mxu0 0.0
      %1833 = vmatprep.subr.mxu0 0.0
      %1834 = vmatpush1.msra.mxu0 0.0
      %1835 = vmatprep.subr.mxu0 0.0
      %1836 = vmatpush1.msra.mxu0 0.0
      %1837 = vmatprep.subr.mxu0 0.0
      %1838 = vmatpush1.msra.mxu0 0.0
      %1839 = vmatprep.subr.mxu0 0.0
      %1840 = vmatpush1.msra.mxu0 0.0
      %1841 = vmatprep.subr.mxu0 0.0
      %1842 = vmatpush1.msra.mxu0 0.0
      %1843 = vmatprep.subr.mxu0 0.0
      %1844 = vmatpush1.msra.mxu0 0.0
      %1845 = vmatprep.subr.mxu0 0.0
      %1846 = vmatpush1.msra.mxu0 0.0
      %1847 = vmatprep.subr.mxu0 0.0
      %1848 = vmatpush1.msra.mxu0 0.0
      %1849 = vmatprep.subr.mxu0 0.0
      %1850 = vmatpush1.msra.mxu0 0.0
      %1851 = vmatprep.subr.mxu0 0.0
      %1852 = vmatpush1.msra.mxu0 0.0
      %1853 = vmatprep.subr.mxu0 0.0
      %1854 = vmatpush1.msra.mxu0 0.0
      %1855 = vmatprep.subr.mxu0 0.0
      %1856 = vmatpush1.msra.mxu0 0.0
      %1857 = vmatprep.subr.mxu0 0.0
      %1858 = vmatpush1.msra.mxu0 0.0
      %1859 = vmatprep.subr.mxu0 0.0
      %1860 = vmatpush1.msra.mxu0 0.0
      %1861 = vmatprep.subr.mxu0 0.0
      %1862 = vmatpush1.msra.mxu0 0.0
      %1863 = vmatprep.subr.mxu0 0.0
      %1864 = vmatpush1.msra.mxu0 0.0
      %1865 = vmatprep.subr.mxu0 0.0
      %1866 = vmatpush1.msra.mxu0 0.0
      %1867 = vmatprep.subr.mxu0 0.0
      %1868 = vmatpush1.msra.mxu0 0.0
      %1869 = vmatprep.mubr.f32.mxu0 0.0
      %1870 = vmatmul.mubr.f32.gmra.mrb[0].mxu0 %v1800
      %v1871 = vpop.f32.mrb[0].mxu0
      %v1872 = vadd.f32 %v1796, %v1871
      %v1873 = vpop.f32.mrb[0].mxu0
      %1874 = vmatprep.mubr.f32.mxu0 0.0
      %1875 = vmatmul.mubr.f32.gmra.mrb[0].mxu0 %v1803
      %v1876 = vpop.f32.mrb[0].mxu0
      %v1877 = vadd.f32 %v1796, %v1876
      %v1878 = vpop.f32.mrb[0].mxu0
      %1879 = vdwg.mxu0
      %v1880 = vadd.f32 %v1643, %v1872
      %v1881 = vadd.f32 %v1644, %v1877
      %1882 = vst.msk [vmem:[%s646] sm:$0xff] %vm661, %v1880
      %1883 = vst.msk [vmem:[%s646 + $0x8] sm:$0xff] %vm661, %v1881
      %s1884 = smul.u32 2, %s28
      %p1885 = scmp.lt.s32.totalorder %s1884, 1
      %s1886 = scalar_select %p1885, %s1884, 1
      %s1887 = smul.addr %s1886, 8
      %s1888 = scalar_lea.vmem %s13, %s1887
      // Predicated region
      $region77: #{transformer_lm_forward.2} parent=71 // pred_check
        %p1889 = pneg %p392
      $region78: #{transformer_lm_forward.2} parent=71 // pred_check_branch
        %1891 = sbr.rel (%p1889) target = $region80
      $region79: #{transformer_lm_forward.2} parent=71 // pred_region
        %s1892 = smul.u32 2, %s28
      $region80: #{transformer_lm_forward.2} parent=71 // pred_fallthru
        _
      // Predicated region
      $region81: #{transformer_lm_forward.2} parent=71 // pred_check
        %p1893 = pneg %p392
      $region82: #{transformer_lm_forward.2} parent=71 // pred_check_branch
        %1895 = sbr.rel (%p1893) target = $region84
      $region83: #{transformer_lm_forward.2} parent=71 // pred_region
        %s1896 = smul.u32 2, %s28
        %p1897 = scmp.lt.s32.totalorder %s1896, 1
        %s1898 = scalar_select %p1897, %s1896, 1
        %s1899 = smul.addr %s1898, 8
        %s1900 = scalar_lea.vmem %s13, %s1899
      $region84: #{transformer_lm_forward.2} parent=71 // pred_fallthru
        _
    $region72: #{transformer_lm_forward.2} parent=5 // pred_fallthru
      _
    %p1901 = scmp.le.s32.totalorder 2, %s19
    // Predicated region
    $region85: #{transformer_lm_forward.2} parent=5 // pred_check
      %p1902 = pneg %p1901
    $region86: #{transformer_lm_forward.2} parent=5 // pred_check_branch
      %1904 = sbr.rel (%p1902) target = $region88
    $region87: #{transformer_lm_forward.2} parent=5 // pred_region
      %s1905 = ssub.s32 %s19, 2
    $region88: #{transformer_lm_forward.2} parent=5 // pred_fallthru
      _
  $region6: #{transformer_lm_forward.2} parent=0 // loop_footer
    %s23 = sadd.s32 1, %s19
  $region7: #{transformer_lm_forward.2} parent=0 // loop_footer_branch
    %18 = sbr.rel target = $region3
  $region8: #{transformer_lm_forward.2} parent=0 // loop_exit
    _

</llo_original>
